<compile_context>
chip_gen: v6e
topology: v6e:2x2x1
jax: 0.10.0
libtpu: 0.0.40
codegen_flags: <defaults>
</compile_context>

<pallas_src>
import jax
import jax.numpy as jnp
from jax.experimental import pallas as pl
from jax.experimental.pallas import tpu as pltpu


class CFG:
    image_input = 32           # per-frame feature dim produced by the backbone
    num_channels = [32, 32]    # TCN channel widths per temporal block
    kernel_size = 3
    patch_size = 4


# ---------------------------------------------------------------------------
# Fused VideoEncoder kernel (patch-embed -> GELU -> pool -> full TCN -> last step)
# ---------------------------------------------------------------------------
def _make_video_encoder_kernel(B, F, P, K, D, k, channels, has_down):
    T = F                       # temporal length of the TCN == number of frames
    BT = B * T

    def kernel(patches_ref, we_ref, be_ref, *rest):
        o_ref = rest[-1]
        blk_refs = rest[:-1]

        # --- per-frame backbone: patch embed -> GELU, whole batch in one MXU matmul ---
        h = jnp.dot(patches_ref[...], we_ref[...],
                    preferred_element_type=jnp.float32) + be_ref[...]     # (B*F*P, D) f32
        h = jax.nn.gelu(h)   # tanh approx (PyTorch default is erf; backbone is synthetic)

        # --- per-frame mean pool as a bf16 MXU matmul; pooling matrix built in-kernel ---
        rows, cols = BT, B * F * P
        row_i = jax.lax.broadcasted_iota(jnp.int32, (rows, cols), 0)
        col_i = jax.lax.broadcasted_iota(jnp.int32, (rows, cols), 1)
        lo = row_i * P
        pool = jnp.where((col_i >= lo) & (col_i < lo + P),
                         1.0 / P, 0.0).astype(jnp.bfloat16)               # (B*T, B*F*P)
        # feats is (B*T, D): batch stacked on sublanes == features.permute(0, 2, 1)
        feats = jnp.dot(pool, h.astype(jnp.bfloat16),
                        preferred_element_type=jnp.float32)

        # --- TCN: dilated causal convs as per-tap shifted matmuls, all weights in VMEM ---
        r_idx = jax.lax.broadcasted_iota(jnp.int32, (BT, 1), 0)           # global row index
        gate_cache = {}

        def shift_gate(s):
            # (BT, 1) f32 0/1 gate: 1 where the row's local time index (row % T) >= s.
            # Built with compares only (no vector int div/mod); memoized per shift.
            if s not in gate_cache:
                m = None
                for b in range(B):
                    mb = (r_idx < b * T) | (r_idx >= b * T + s)
                    m = mb if m is None else (m & mb)
                gate_cache[s] = jnp.where(m, 1.0, 0.0)
            return gate_cache[s]

        def causal_conv(xin, w_ref, b_ref, dilation, c_in):
            # xin: (B*T, c_in) f32; w_ref: (k*c_in, c_out) bf16 (tap-major); b_ref: (1, c_out) f32
            acc = None
            for j in range(k):
                s = (k - 1 - j) * dilation                 # causal left shift of tap j
                if s == 0:
                    xs = xin
                else:
                    xs = pltpu.roll(xin, shift=s, axis=0) * shift_gate(s)
                part = jnp.dot(xs.astype(jnp.bfloat16),
                               w_ref[j * c_in:(j + 1) * c_in, :],
                               preferred_element_type=jnp.float32)
                acc = part if acc is None else acc + part
            return acc + b_ref[...]

        out = feats
        idx = 0
        c_in = D
        for level, c_out in enumerate(channels):
            dilation = 2 ** level
            w1, b1, w2, b2 = blk_refs[idx:idx + 4]
            idx += 4
            if has_down[level]:
                wd, bd = blk_refs[idx:idx + 2]
                idx += 2
                res = jnp.dot(out.astype(jnp.bfloat16), wd[...],
                              preferred_element_type=jnp.float32) + bd[...]
            else:
                res = out                                   # identity shortcut
            h1 = jnp.maximum(causal_conv(out, w1, b1, dilation, c_in), 0.0)
            h2 = jnp.maximum(causal_conv(h1, w2, b2, dilation, c_out), 0.0)
            out = jnp.maximum(h2 + res, 0.0)                # residual + final ReLU
            c_in = c_out

        # --- only the last time step leaves the kernel: tcn_output[:, :, -1] -> (B, C_last) ---
        last = jnp.concatenate(
            [out[(b + 1) * T - 1:(b + 1) * T, :] for b in range(B)], axis=0)
        o_ref[...] = last.astype(o_ref.dtype)

    return kernel


# ---------------------------------------------------------------------------
# Full VideoEncoder forward (single pallas_call, single grid step)
# ---------------------------------------------------------------------------
def video_encoder_forward(x, params):
    # x: (B, F, C, H, W)
    B, F, C, H, W = x.shape
    p = CFG.patch_size
    D = CFG.image_input
    k = CFG.kernel_size
    channels = CFG.num_channels
    Ph, Pw = H // p, W // p
    P = Ph * Pw
    K = C * p * p

    # Patchify: cast to bf16 BEFORE the transpose (halves HBM traffic), then
    # (B, F, C, H, W) -> (B*F*P, K) with the patch feature dim on lanes.
    xb = x.astype(jnp.bfloat16)
    patches = xb.reshape(B, F, C, Ph, p, Pw, p)
    patches = patches.transpose(0, 1, 3, 5, 2, 4, 6)
    patches = patches.reshape(B * F * P, K)

    has_down = [blk["wd"] is not None for blk in params["tcn"]]
    kernel = _make_video_encoder_kernel(B, F, P, K, D, k, channels, has_down)

    def full_spec(shape):
        nd = len(shape)
        return pl.BlockSpec(shape, lambda i: (0,) * nd)

    args = [patches, params["w_embed"], params["b_embed"]]
    for blk in params["tcn"]:
        args += [blk["w1"], blk["b1"], blk["w2"], blk["b2"]]
        if blk["wd"] is not None:
            args += [blk["wd"], blk["bd"]]
    in_specs = [full_spec(a.shape) for a in args]

    C_last = channels[-1]

    # Advisory cost estimate so XLA can schedule the wrapper patchify around this tiny call.
    flops = 2 * (B * F * P) * K * D + 2 * (B * F) * (B * F * P) * D
    c_in = D
    for c_out in channels:
        flops += 2 * k * (B * F) * c_in * c_out + 2 * k * (B * F) * c_out * c_out
        if c_in != c_out:
            flops += 2 * (B * F) * c_in * c_out
        c_in = c_out
    bytes_accessed = int(sum(a.size * a.dtype.itemsize for a in args) + B * C_last * 4)
    cost = pl.CostEstimate(flops=int(flops),
                           transcendentals=int(B * F * P * D),
                           bytes_accessed=bytes_accessed)

    return pl.pallas_call(
        kernel,
        out_shape=jax.ShapeDtypeStruct((B, C_last), jnp.float32),
        grid=(1,),                                      # single step: all overhead paid once
        in_specs=in_specs,
        out_specs=pl.BlockSpec((B, C_last), lambda i: (0, 0)),
        compiler_params=pltpu.CompilerParams(dimension_semantics=("arbitrary",)),
        cost_estimate=cost,
    )(*args)


# ---------------------------------------------------------------------------
# Deterministic parameter init (conv weights pre-packed for per-tap matmuls)
# ---------------------------------------------------------------------------
def init_params(key, C, patch):
    D = CFG.image_input
    k = CFG.kernel_size
    K = C * patch * patch
    keys = iter(jax.random.split(key, 2 + 6 * len(CFG.num_channels)))

    def dense(kk, shape, fan_in, dtype=jnp.float32):
        w = jax.random.normal(kk, shape, jnp.float32) / jnp.sqrt(fan_in)
        return w.astype(dtype)

    params = {
        "w_embed": dense(next(keys), (K, D), K, jnp.bfloat16),   # bf16 MXU operand
        "b_embed": dense(next(keys), (1, D), D),                 # f32 bias
        "tcn": [],
    }

    in_ch = D
    for out_ch in CFG.num_channels:
        # raw conv weights are (k, C_out, C_in); pack to (k*C_in, C_out), tap-major
        w1 = dense(next(keys), (k, out_ch, in_ch), k * in_ch)
        w2 = dense(next(keys), (k, out_ch, out_ch), k * out_ch)
        blk = {
            "w1": w1.transpose(0, 2, 1).reshape(k * in_ch, out_ch).astype(jnp.bfloat16),
            "b1": dense(next(keys), (1, out_ch), out_ch),
            "w2": w2.transpose(0, 2, 1).reshape(k * out_ch, out_ch).astype(jnp.bfloat16),
            "b2": dense(next(keys), (1, out_ch), out_ch),
        }
        if in_ch != out_ch:
            wd = dense(next(keys), (1, out_ch, in_ch), in_ch)    # 1x1 downsample conv
            blk["wd"] = wd[0].T.astype(jnp.bfloat16)             # (C_in, C_out)
            blk["bd"] = dense(next(keys), (1, out_ch), out_ch)
        else:
            _ = next(keys)
            _ = next(keys)
            blk["wd"] = None
            blk["bd"] = None
        params["tcn"].append(blk)
        in_ch = out_ch
    return params


if __name__ == "__main__":
    B, F, C, H, W = 2, 8, 3, 16, 16
    key = jax.random.PRNGKey(0)
    k_x, k_p = jax.random.split(key)
    x = jax.random.normal(k_x, (B, F, C, H, W), jnp.float32)
    params = init_params(k_p, C, CFG.patch_size)

    out = jax.jit(video_encoder_forward)(x, params)
    out = jax.block_until_ready(out)
    assert out.shape == (B, CFG.num_channels[-1]), out.shape
    assert jnp.all(jnp.isfinite(out))
    print("KERNEL_OK")
</pallas_src>

<mosaic_0001>
module attributes {stable_mosaic.version = 11 : i64} {
  func.func @kernel(%arg0: i32, %arg1: memref<256x48xbf16, #tpu.memory_space<vmem>>, %arg2: memref<48x32xbf16, #tpu.memory_space<vmem>>, %arg3: memref<1x32xf32, #tpu.memory_space<vmem>>, %arg4: memref<96x32xbf16, #tpu.memory_space<vmem>>, %arg5: memref<1x32xf32, #tpu.memory_space<vmem>>, %arg6: memref<96x32xbf16, #tpu.memory_space<vmem>>, %arg7: memref<1x32xf32, #tpu.memory_space<vmem>>, %arg8: memref<96x32xbf16, #tpu.memory_space<vmem>>, %arg9: memref<1x32xf32, #tpu.memory_space<vmem>>, %arg10: memref<96x32xbf16, #tpu.memory_space<vmem>>, %arg11: memref<1x32xf32, #tpu.memory_space<vmem>>, %arg12: memref<2x32xf32, #tpu.memory_space<vmem>>) attributes {dimension_semantics = [#tpu.dimension_semantics<arbitrary>], iteration_bounds = array<i64: 1>, scalar_prefetch = 0 : i64, scratch_operands = 0 : i64, tpu.core_type = #tpu.core_type<tc>, window_params = [{pipeline_mode = #tpu.pipeline_mode<synchronous>, transform_indices = @transform_0, window_bounds = array<i64: 256, 48>}, {pipeline_mode = #tpu.pipeline_mode<synchronous>, transform_indices = @transform_1, window_bounds = array<i64: 48, 32>}, {pipeline_mode = #tpu.pipeline_mode<synchronous>, transform_indices = @transform_2, window_bounds = array<i64: 1, 32>}, {pipeline_mode = #tpu.pipeline_mode<synchronous>, transform_indices = @transform_3, window_bounds = array<i64: 96, 32>}, {pipeline_mode = #tpu.pipeline_mode<synchronous>, transform_indices = @transform_4, window_bounds = array<i64: 1, 32>}, {pipeline_mode = #tpu.pipeline_mode<synchronous>, transform_indices = @transform_5, window_bounds = array<i64: 96, 32>}, {pipeline_mode = #tpu.pipeline_mode<synchronous>, transform_indices = @transform_6, window_bounds = array<i64: 1, 32>}, {pipeline_mode = #tpu.pipeline_mode<synchronous>, transform_indices = @transform_7, window_bounds = array<i64: 96, 32>}, {pipeline_mode = #tpu.pipeline_mode<synchronous>, transform_indices = @transform_8, window_bounds = array<i64: 1, 32>}, {pipeline_mode = #tpu.pipeline_mode<synchronous>, transform_indices = @transform_9, window_bounds = array<i64: 96, 32>}, {pipeline_mode = #tpu.pipeline_mode<synchronous>, transform_indices = @transform_10, window_bounds = array<i64: 1, 32>}, {pipeline_mode = #tpu.pipeline_mode<synchronous>, transform_indices = @transform_11, window_bounds = array<i64: 2, 32>}]} {
    %c0 = arith.constant 0 : index
    %c0_0 = arith.constant 0 : index
    %0 = vector.load %arg1[%c0, %c0_0] : memref<256x48xbf16, #tpu.memory_space<vmem>>, vector<256x48xbf16>
    %c0_1 = arith.constant 0 : index
    %c0_2 = arith.constant 0 : index
    %1 = vector.load %arg2[%c0_1, %c0_2] : memref<48x32xbf16, #tpu.memory_space<vmem>>, vector<48x32xbf16>
    %cst = arith.constant dense<0.000000e+00> : vector<256x32xf32>
    %2 = tpu.matmul %0, %1, %cst {dimension_numbers = #tpu.dot_dimension_numbers<[1], [0], [0], [1], [0, 0, 1, 1], [], []>} : vector<256x48xbf16>, vector<48x32xbf16>, vector<256x32xf32> -> vector<256x32xf32>
    %c0_3 = arith.constant 0 : index
    %c0_4 = arith.constant 0 : index
    %3 = vector.load %arg3[%c0_3, %c0_4] : memref<1x32xf32, #tpu.memory_space<vmem>>, vector<1x32xf32>
    %4 = vector.broadcast %3 : vector<1x32xf32> to vector<256x32xf32>
    %5 = arith.addf %2, %4 : vector<256x32xf32>
    %6 = arith.mulf %5, %5 : vector<256x32xf32>
    %7 = arith.mulf %5, %6 : vector<256x32xf32>
    %cst_5 = arith.constant 4.471500e-02 : f32
    %8 = vector.broadcast %cst_5 : f32 to vector<256x32xf32>
    %9 = arith.mulf %8, %7 : vector<256x32xf32>
    %10 = arith.addf %5, %9 : vector<256x32xf32>
    %cst_6 = arith.constant 0.797884583 : f32
    %11 = vector.broadcast %cst_6 : f32 to vector<256x32xf32>
    %12 = arith.mulf %11, %10 : vector<256x32xf32>
    %13 = math.tanh %12 : vector<256x32xf32>
    %cst_7 = arith.constant 1.000000e+00 : f32
    %14 = vector.broadcast %cst_7 : f32 to vector<256x32xf32>
    %15 = arith.addf %14, %13 : vector<256x32xf32>
    %cst_8 = arith.constant 5.000000e-01 : f32
    %16 = vector.broadcast %cst_8 : f32 to vector<256x32xf32>
    %17 = arith.mulf %16, %15 : vector<256x32xf32>
    %18 = arith.mulf %5, %17 : vector<256x32xf32>
    %19 = tpu.iota {dimensions = array<i32: 0>} : vector<16x256xi32>
    %20 = tpu.iota {dimensions = array<i32: 1>} : vector<16x256xi32>
    %c16_i32 = arith.constant 16 : i32
    %21 = vector.broadcast %c16_i32 : i32 to vector<16x256xi32>
    %22 = arith.muli %19, %21 : vector<16x256xi32>
    %23 = arith.cmpi sge, %20, %22 : vector<16x256xi32>
    %c16_i32_9 = arith.constant 16 : i32
    %24 = vector.broadcast %c16_i32_9 : i32 to vector<16x256xi32>
    %25 = arith.addi %22, %24 : vector<16x256xi32>
    %26 = arith.cmpi slt, %20, %25 : vector<16x256xi32>
    %27 = arith.andi %23, %26 : vector<16x256xi1>
    %cst_10 = arith.constant 6.250000e-02 : f32
    %cst_11 = arith.constant 0.000000e+00 : f32
    %28 = vector.broadcast %cst_10 : f32 to vector<16x256xf32>
    %29 = vector.broadcast %cst_11 : f32 to vector<16x256xf32>
    %30 = arith.select %27, %28, %29 : vector<16x256xi1>, vector<16x256xf32>
    %31 = arith.truncf %30 : vector<16x256xf32> to vector<16x256xbf16>
    %32 = arith.truncf %18 : vector<256x32xf32> to vector<256x32xbf16>
    %cst_12 = arith.constant dense<0.000000e+00> : vector<16x32xf32>
    %33 = tpu.matmul %31, %32, %cst_12 {dimension_numbers = #tpu.dot_dimension_numbers<[1], [0], [0], [1], [0, 0, 1, 1], [], []>} : vector<16x256xbf16>, vector<256x32xbf16>, vector<16x32xf32> -> vector<16x32xf32>
    %34 = tpu.iota {dimensions = array<i32: 0>} : vector<16x1xi32>
    %c2_i32 = arith.constant 2 : i32
    %35 = tpu.dynamic_rotate %33 by %c2_i32 dim 0 : vector<16x32xf32>, i32 -> vector<16x32xf32>
    %c0_i32 = arith.constant 0 : i32
    %36 = vector.broadcast %c0_i32 : i32 to vector<16x1xi32>
    %37 = arith.cmpi slt, %34, %36 : vector<16x1xi32>
    %c2_i32_13 = arith.constant 2 : i32
    %38 = vector.broadcast %c2_i32_13 : i32 to vector<16x1xi32>
    %39 = arith.cmpi sge, %34, %38 : vector<16x1xi32>
    %40 = arith.ori %37, %39 : vector<16x1xi1>
    %c8_i32 = arith.constant 8 : i32
    %41 = vector.broadcast %c8_i32 : i32 to vector<16x1xi32>
    %42 = arith.cmpi slt, %34, %41 : vector<16x1xi32>
    %c10_i32 = arith.constant 10 : i32
    %43 = vector.broadcast %c10_i32 : i32 to vector<16x1xi32>
    %44 = arith.cmpi sge, %34, %43 : vector<16x1xi32>
    %45 = arith.ori %42, %44 : vector<16x1xi1>
    %46 = arith.andi %40, %45 : vector<16x1xi1>
    %cst_14 = arith.constant 1.000000e+00 : f32
    %cst_15 = arith.constant 0.000000e+00 : f32
    %47 = vector.broadcast %cst_14 : f32 to vector<16x1xf32>
    %48 = vector.broadcast %cst_15 : f32 to vector<16x1xf32>
    %49 = arith.select %46, %47, %48 : vector<16x1xi1>, vector<16x1xf32>
    %50 = vector.broadcast %49 : vector<16x1xf32> to vector<16x32xf32>
    %51 = arith.mulf %35, %50 : vector<16x32xf32>
    %52 = arith.truncf %51 : vector<16x32xf32> to vector<16x32xbf16>
    %c0_16 = arith.constant 0 : index
    %c0_17 = arith.constant 0 : index
    %53 = vector.load %arg4[%c0_16, %c0_17] : memref<96x32xbf16, #tpu.memory_space<vmem>>, vector<32x32xbf16>
    %cst_18 = arith.constant dense<0.000000e+00> : vector<16x32xf32>
    %54 = tpu.matmul %52, %53, %cst_18 {dimension_numbers = #tpu.dot_dimension_numbers<[1], [0], [0], [1], [0, 0, 1, 1], [], []>} : vector<16x32xbf16>, vector<32x32xbf16>, vector<16x32xf32> -> vector<16x32xf32>
    %c1_i32 = arith.constant 1 : i32
    %55 = tpu.dynamic_rotate %33 by %c1_i32 dim 0 : vector<16x32xf32>, i32 -> vector<16x32xf32>
    %c0_i32_19 = arith.constant 0 : i32
    %56 = vector.broadcast %c0_i32_19 : i32 to vector<16x1xi32>
    %57 = arith.cmpi slt, %34, %56 : vector<16x1xi32>
    %c1_i32_20 = arith.constant 1 : i32
    %58 = vector.broadcast %c1_i32_20 : i32 to vector<16x1xi32>
    %59 = arith.cmpi sge, %34, %58 : vector<16x1xi32>
    %60 = arith.ori %57, %59 : vector<16x1xi1>
    %c8_i32_21 = arith.constant 8 : i32
    %61 = vector.broadcast %c8_i32_21 : i32 to vector<16x1xi32>
    %62 = arith.cmpi slt, %34, %61 : vector<16x1xi32>
    %c9_i32 = arith.constant 9 : i32
    %63 = vector.broadcast %c9_i32 : i32 to vector<16x1xi32>
    %64 = arith.cmpi sge, %34, %63 : vector<16x1xi32>
    %65 = arith.ori %62, %64 : vector<16x1xi1>
    %66 = arith.andi %60, %65 : vector<16x1xi1>
    %cst_22 = arith.constant 1.000000e+00 : f32
    %cst_23 = arith.constant 0.000000e+00 : f32
    %67 = vector.broadcast %cst_22 : f32 to vector<16x1xf32>
    %68 = vector.broadcast %cst_23 : f32 to vector<16x1xf32>
    %69 = arith.select %66, %67, %68 : vector<16x1xi1>, vector<16x1xf32>
    %70 = vector.broadcast %69 : vector<16x1xf32> to vector<16x32xf32>
    %71 = arith.mulf %55, %70 : vector<16x32xf32>
    %72 = arith.truncf %71 : vector<16x32xf32> to vector<16x32xbf16>
    %c32 = arith.constant 32 : index
    %c0_24 = arith.constant 0 : index
    %73 = vector.load %arg4[%c32, %c0_24] : memref<96x32xbf16, #tpu.memory_space<vmem>>, vector<32x32xbf16>
    %cst_25 = arith.constant dense<0.000000e+00> : vector<16x32xf32>
    %74 = tpu.matmul %72, %73, %cst_25 {dimension_numbers = #tpu.dot_dimension_numbers<[1], [0], [0], [1], [0, 0, 1, 1], [], []>} : vector<16x32xbf16>, vector<32x32xbf16>, vector<16x32xf32> -> vector<16x32xf32>
    %75 = arith.addf %54, %74 : vector<16x32xf32>
    %76 = arith.truncf %33 : vector<16x32xf32> to vector<16x32xbf16>
    %c64 = arith.constant 64 : index
    %c0_26 = arith.constant 0 : index
    %77 = vector.load %arg4[%c64, %c0_26] : memref<96x32xbf16, #tpu.memory_space<vmem>>, vector<32x32xbf16>
    %cst_27 = arith.constant dense<0.000000e+00> : vector<16x32xf32>
    %78 = tpu.matmul %76, %77, %cst_27 {dimension_numbers = #tpu.dot_dimension_numbers<[1], [0], [0], [1], [0, 0, 1, 1], [], []>} : vector<16x32xbf16>, vector<32x32xbf16>, vector<16x32xf32> -> vector<16x32xf32>
    %79 = arith.addf %75, %78 : vector<16x32xf32>
    %c0_28 = arith.constant 0 : index
    %c0_29 = arith.constant 0 : index
    %80 = vector.load %arg5[%c0_28, %c0_29] : memref<1x32xf32, #tpu.memory_space<vmem>>, vector<1x32xf32>
    %81 = vector.broadcast %80 : vector<1x32xf32> to vector<16x32xf32>
    %82 = arith.addf %79, %81 : vector<16x32xf32>
    %cst_30 = arith.constant 0.000000e+00 : f32
    %83 = vector.broadcast %cst_30 : f32 to vector<16x32xf32>
    %84 = arith.maximumf %82, %83 : vector<16x32xf32>
    %c2_i32_31 = arith.constant 2 : i32
    %85 = tpu.dynamic_rotate %84 by %c2_i32_31 dim 0 : vector<16x32xf32>, i32 -> vector<16x32xf32>
    %86 = vector.broadcast %49 : vector<16x1xf32> to vector<16x32xf32>
    %87 = arith.mulf %85, %86 : vector<16x32xf32>
    %88 = arith.truncf %87 : vector<16x32xf32> to vector<16x32xbf16>
    %c0_32 = arith.constant 0 : index
    %c0_33 = arith.constant 0 : index
    %89 = vector.load %arg6[%c0_32, %c0_33] : memref<96x32xbf16, #tpu.memory_space<vmem>>, vector<32x32xbf16>
    %cst_34 = arith.constant dense<0.000000e+00> : vector<16x32xf32>
    %90 = tpu.matmul %88, %89, %cst_34 {dimension_numbers = #tpu.dot_dimension_numbers<[1], [0], [0], [1], [0, 0, 1, 1], [], []>} : vector<16x32xbf16>, vector<32x32xbf16>, vector<16x32xf32> -> vector<16x32xf32>
    %c1_i32_35 = arith.constant 1 : i32
    %91 = tpu.dynamic_rotate %84 by %c1_i32_35 dim 0 : vector<16x32xf32>, i32 -> vector<16x32xf32>
    %92 = vector.broadcast %69 : vector<16x1xf32> to vector<16x32xf32>
    %93 = arith.mulf %91, %92 : vector<16x32xf32>
    %94 = arith.truncf %93 : vector<16x32xf32> to vector<16x32xbf16>
    %c32_36 = arith.constant 32 : index
    %c0_37 = arith.constant 0 : index
    %95 = vector.load %arg6[%c32_36, %c0_37] : memref<96x32xbf16, #tpu.memory_space<vmem>>, vector<32x32xbf16>
    %cst_38 = arith.constant dense<0.000000e+00> : vector<16x32xf32>
    %96 = tpu.matmul %94, %95, %cst_38 {dimension_numbers = #tpu.dot_dimension_numbers<[1], [0], [0], [1], [0, 0, 1, 1], [], []>} : vector<16x32xbf16>, vector<32x32xbf16>, vector<16x32xf32> -> vector<16x32xf32>
    %97 = arith.addf %90, %96 : vector<16x32xf32>
    %98 = arith.truncf %84 : vector<16x32xf32> to vector<16x32xbf16>
    %c64_39 = arith.constant 64 : index
    %c0_40 = arith.constant 0 : index
    %99 = vector.load %arg6[%c64_39, %c0_40] : memref<96x32xbf16, #tpu.memory_space<vmem>>, vector<32x32xbf16>
    %cst_41 = arith.constant dense<0.000000e+00> : vector<16x32xf32>
    %100 = tpu.matmul %98, %99, %cst_41 {dimension_numbers = #tpu.dot_dimension_numbers<[1], [0], [0], [1], [0, 0, 1, 1], [], []>} : vector<16x32xbf16>, vector<32x32xbf16>, vector<16x32xf32> -> vector<16x32xf32>
    %101 = arith.addf %97, %100 : vector<16x32xf32>
    %c0_42 = arith.constant 0 : index
    %c0_43 = arith.constant 0 : index
    %102 = vector.load %arg7[%c0_42, %c0_43] : memref<1x32xf32, #tpu.memory_space<vmem>>, vector<1x32xf32>
    %103 = vector.broadcast %102 : vector<1x32xf32> to vector<16x32xf32>
    %104 = arith.addf %101, %103 : vector<16x32xf32>
    %cst_44 = arith.constant 0.000000e+00 : f32
    %105 = vector.broadcast %cst_44 : f32 to vector<16x32xf32>
    %106 = arith.maximumf %104, %105 : vector<16x32xf32>
    %107 = arith.addf %106, %33 : vector<16x32xf32>
    %cst_45 = arith.constant 0.000000e+00 : f32
    %108 = vector.broadcast %cst_45 : f32 to vector<16x32xf32>
    %109 = arith.maximumf %107, %108 : vector<16x32xf32>
    %c4_i32 = arith.constant 4 : i32
    %110 = tpu.dynamic_rotate %109 by %c4_i32 dim 0 : vector<16x32xf32>, i32 -> vector<16x32xf32>
    %c0_i32_46 = arith.constant 0 : i32
    %111 = vector.broadcast %c0_i32_46 : i32 to vector<16x1xi32>
    %112 = arith.cmpi slt, %34, %111 : vector<16x1xi32>
    %c4_i32_47 = arith.constant 4 : i32
    %113 = vector.broadcast %c4_i32_47 : i32 to vector<16x1xi32>
    %114 = arith.cmpi sge, %34, %113 : vector<16x1xi32>
    %115 = arith.ori %112, %114 : vector<16x1xi1>
    %c8_i32_48 = arith.constant 8 : i32
    %116 = vector.broadcast %c8_i32_48 : i32 to vector<16x1xi32>
    %117 = arith.cmpi slt, %34, %116 : vector<16x1xi32>
    %c12_i32 = arith.constant 12 : i32
    %118 = vector.broadcast %c12_i32 : i32 to vector<16x1xi32>
    %119 = arith.cmpi sge, %34, %118 : vector<16x1xi32>
    %120 = arith.ori %117, %119 : vector<16x1xi1>
    %121 = arith.andi %115, %120 : vector<16x1xi1>
    %cst_49 = arith.constant 1.000000e+00 : f32
    %cst_50 = arith.constant 0.000000e+00 : f32
    %122 = vector.broadcast %cst_49 : f32 to vector<16x1xf32>
    %123 = vector.broadcast %cst_50 : f32 to vector<16x1xf32>
    %124 = arith.select %121, %122, %123 : vector<16x1xi1>, vector<16x1xf32>
    %125 = vector.broadcast %124 : vector<16x1xf32> to vector<16x32xf32>
    %126 = arith.mulf %110, %125 : vector<16x32xf32>
    %127 = arith.truncf %126 : vector<16x32xf32> to vector<16x32xbf16>
    %c0_51 = arith.constant 0 : index
    %c0_52 = arith.constant 0 : index
    %128 = vector.load %arg8[%c0_51, %c0_52] : memref<96x32xbf16, #tpu.memory_space<vmem>>, vector<32x32xbf16>
    %cst_53 = arith.constant dense<0.000000e+00> : vector<16x32xf32>
    %129 = tpu.matmul %127, %128, %cst_53 {dimension_numbers = #tpu.dot_dimension_numbers<[1], [0], [0], [1], [0, 0, 1, 1], [], []>} : vector<16x32xbf16>, vector<32x32xbf16>, vector<16x32xf32> -> vector<16x32xf32>
    %c2_i32_54 = arith.constant 2 : i32
    %130 = tpu.dynamic_rotate %109 by %c2_i32_54 dim 0 : vector<16x32xf32>, i32 -> vector<16x32xf32>
    %131 = vector.broadcast %49 : vector<16x1xf32> to vector<16x32xf32>
    %132 = arith.mulf %130, %131 : vector<16x32xf32>
    %133 = arith.truncf %132 : vector<16x32xf32> to vector<16x32xbf16>
    %c32_55 = arith.constant 32 : index
    %c0_56 = arith.constant 0 : index
    %134 = vector.load %arg8[%c32_55, %c0_56] : memref<96x32xbf16, #tpu.memory_space<vmem>>, vector<32x32xbf16>
    %cst_57 = arith.constant dense<0.000000e+00> : vector<16x32xf32>
    %135 = tpu.matmul %133, %134, %cst_57 {dimension_numbers = #tpu.dot_dimension_numbers<[1], [0], [0], [1], [0, 0, 1, 1], [], []>} : vector<16x32xbf16>, vector<32x32xbf16>, vector<16x32xf32> -> vector<16x32xf32>
    %136 = arith.addf %129, %135 : vector<16x32xf32>
    %137 = arith.truncf %109 : vector<16x32xf32> to vector<16x32xbf16>
    %c64_58 = arith.constant 64 : index
    %c0_59 = arith.constant 0 : index
    %138 = vector.load %arg8[%c64_58, %c0_59] : memref<96x32xbf16, #tpu.memory_space<vmem>>, vector<32x32xbf16>
    %cst_60 = arith.constant dense<0.000000e+00> : vector<16x32xf32>
    %139 = tpu.matmul %137, %138, %cst_60 {dimension_numbers = #tpu.dot_dimension_numbers<[1], [0], [0], [1], [0, 0, 1, 1], [], []>} : vector<16x32xbf16>, vector<32x32xbf16>, vector<16x32xf32> -> vector<16x32xf32>
    %140 = arith.addf %136, %139 : vector<16x32xf32>
    %c0_61 = arith.constant 0 : index
    %c0_62 = arith.constant 0 : index
    %141 = vector.load %arg9[%c0_61, %c0_62] : memref<1x32xf32, #tpu.memory_space<vmem>>, vector<1x32xf32>
    %142 = vector.broadcast %141 : vector<1x32xf32> to vector<16x32xf32>
    %143 = arith.addf %140, %142 : vector<16x32xf32>
    %cst_63 = arith.constant 0.000000e+00 : f32
    %144 = vector.broadcast %cst_63 : f32 to vector<16x32xf32>
    %145 = arith.maximumf %143, %144 : vector<16x32xf32>
    %c4_i32_64 = arith.constant 4 : i32
    %146 = tpu.dynamic_rotate %145 by %c4_i32_64 dim 0 : vector<16x32xf32>, i32 -> vector<16x32xf32>
    %147 = vector.broadcast %124 : vector<16x1xf32> to vector<16x32xf32>
    %148 = arith.mulf %146, %147 : vector<16x32xf32>
    %149 = arith.truncf %148 : vector<16x32xf32> to vector<16x32xbf16>
    %c0_65 = arith.constant 0 : index
    %c0_66 = arith.constant 0 : index
    %150 = vector.load %arg10[%c0_65, %c0_66] : memref<96x32xbf16, #tpu.memory_space<vmem>>, vector<32x32xbf16>
    %cst_67 = arith.constant dense<0.000000e+00> : vector<16x32xf32>
    %151 = tpu.matmul %149, %150, %cst_67 {dimension_numbers = #tpu.dot_dimension_numbers<[1], [0], [0], [1], [0, 0, 1, 1], [], []>} : vector<16x32xbf16>, vector<32x32xbf16>, vector<16x32xf32> -> vector<16x32xf32>
    %c2_i32_68 = arith.constant 2 : i32
    %152 = tpu.dynamic_rotate %145 by %c2_i32_68 dim 0 : vector<16x32xf32>, i32 -> vector<16x32xf32>
    %153 = vector.broadcast %49 : vector<16x1xf32> to vector<16x32xf32>
    %154 = arith.mulf %152, %153 : vector<16x32xf32>
    %155 = arith.truncf %154 : vector<16x32xf32> to vector<16x32xbf16>
    %c32_69 = arith.constant 32 : index
    %c0_70 = arith.constant 0 : index
    %156 = vector.load %arg10[%c32_69, %c0_70] : memref<96x32xbf16, #tpu.memory_space<vmem>>, vector<32x32xbf16>
    %cst_71 = arith.constant dense<0.000000e+00> : vector<16x32xf32>
    %157 = tpu.matmul %155, %156, %cst_71 {dimension_numbers = #tpu.dot_dimension_numbers<[1], [0], [0], [1], [0, 0, 1, 1], [], []>} : vector<16x32xbf16>, vector<32x32xbf16>, vector<16x32xf32> -> vector<16x32xf32>
    %158 = arith.addf %151, %157 : vector<16x32xf32>
    %159 = arith.truncf %145 : vector<16x32xf32> to vector<16x32xbf16>
    %c64_72 = arith.constant 64 : index
    %c0_73 = arith.constant 0 : index
    %160 = vector.load %arg10[%c64_72, %c0_73] : memref<96x32xbf16, #tpu.memory_space<vmem>>, vector<32x32xbf16>
    %cst_74 = arith.constant dense<0.000000e+00> : vector<16x32xf32>
    %161 = tpu.matmul %159, %160, %cst_74 {dimension_numbers = #tpu.dot_dimension_numbers<[1], [0], [0], [1], [0, 0, 1, 1], [], []>} : vector<16x32xbf16>, vector<32x32xbf16>, vector<16x32xf32> -> vector<16x32xf32>
    %162 = arith.addf %158, %161 : vector<16x32xf32>
    %c0_75 = arith.constant 0 : index
    %c0_76 = arith.constant 0 : index
    %163 = vector.load %arg11[%c0_75, %c0_76] : memref<1x32xf32, #tpu.memory_space<vmem>>, vector<1x32xf32>
    %164 = vector.broadcast %163 : vector<1x32xf32> to vector<16x32xf32>
    %165 = arith.addf %162, %164 : vector<16x32xf32>
    %cst_77 = arith.constant 0.000000e+00 : f32
    %166 = vector.broadcast %cst_77 : f32 to vector<16x32xf32>
    %167 = arith.maximumf %165, %166 : vector<16x32xf32>
    %168 = arith.addf %167, %109 : vector<16x32xf32>
    %cst_78 = arith.constant 0.000000e+00 : f32
    %169 = vector.broadcast %cst_78 : f32 to vector<16x32xf32>
    %170 = arith.maximumf %168, %169 : vector<16x32xf32>
    %171 = vector.extract_strided_slice %170 {offsets = [7, 0], sizes = [1, 32], strides = [1, 1]} : vector<16x32xf32> to vector<1x32xf32>
    %172 = vector.extract_strided_slice %170 {offsets = [15, 0], sizes = [1, 32], strides = [1, 1]} : vector<16x32xf32> to vector<1x32xf32>
    %173 = tpu.concatenate %171, %172 in 0 : vector<1x32xf32>, vector<1x32xf32> -> vector<2x32xf32>
    %c0_79 = arith.constant 0 : index
    %c0_80 = arith.constant 0 : index
    %174 = vector.load %arg12[%c0_79, %c0_80] : memref<2x32xf32, #tpu.memory_space<vmem>>, vector<2x32xf32>
    tpu.vector_store %arg12[%c0_79, %c0_80], %173 {strides = array<i32>} : memref<2x32xf32, #tpu.memory_space<vmem>>, vector<2x32xf32>,
    return
  }
  func.func @transform_0(%arg0: i32) -> (i32, i32) {
    %c0_i32 = arith.constant 0 : i32
    %c0_i32_0 = arith.constant 0 : i32
    %c0_i32_1 = arith.constant 0 : i32
    return %c0_i32, %c0_i32_0 : i32, i32
  }
  func.func @transform_1(%arg0: i32) -> (i32, i32) {
    %c0_i32 = arith.constant 0 : i32
    %c0_i32_0 = arith.constant 0 : i32
    %c0_i32_1 = arith.constant 0 : i32
    return %c0_i32, %c0_i32_0 : i32, i32
  }
  func.func @transform_2(%arg0: i32) -> (i32, i32) {
    %c0_i32 = arith.constant 0 : i32
    %c0_i32_0 = arith.constant 0 : i32
    %c0_i32_1 = arith.constant 0 : i32
    return %c0_i32, %c0_i32_0 : i32, i32
  }
  func.func @transform_3(%arg0: i32) -> (i32, i32) {
    %c0_i32 = arith.constant 0 : i32
    %c0_i32_0 = arith.constant 0 : i32
    %c0_i32_1 = arith.constant 0 : i32
    return %c0_i32, %c0_i32_0 : i32, i32
  }
  func.func @transform_4(%arg0: i32) -> (i32, i32) {
    %c0_i32 = arith.constant 0 : i32
    %c0_i32_0 = arith.constant 0 : i32
    %c0_i32_1 = arith.constant 0 : i32
    return %c0_i32, %c0_i32_0 : i32, i32
  }
  func.func @transform_5(%arg0: i32) -> (i32, i32) {
    %c0_i32 = arith.constant 0 : i32
    %c0_i32_0 = arith.constant 0 : i32
    %c0_i32_1 = arith.constant 0 : i32
    return %c0_i32, %c0_i32_0 : i32, i32
  }
  func.func @transform_6(%arg0: i32) -> (i32, i32) {
    %c0_i32 = arith.constant 0 : i32
    %c0_i32_0 = arith.constant 0 : i32
    %c0_i32_1 = arith.constant 0 : i32
    return %c0_i32, %c0_i32_0 : i32, i32
  }
  func.func @transform_7(%arg0: i32) -> (i32, i32) {
    %c0_i32 = arith.constant 0 : i32
    %c0_i32_0 = arith.constant 0 : i32
    %c0_i32_1 = arith.constant 0 : i32
    return %c0_i32, %c0_i32_0 : i32, i32
  }
  func.func @transform_8(%arg0: i32) -> (i32, i32) {
    %c0_i32 = arith.constant 0 : i32
    %c0_i32_0 = arith.constant 0 : i32
    %c0_i32_1 = arith.constant 0 : i32
    return %c0_i32, %c0_i32_0 : i32, i32
  }
  func.func @transform_9(%arg0: i32) -> (i32, i32) {
    %c0_i32 = arith.constant 0 : i32
    %c0_i32_0 = arith.constant 0 : i32
    %c0_i32_1 = arith.constant 0 : i32
    return %c0_i32, %c0_i32_0 : i32, i32
  }
  func.func @transform_10(%arg0: i32) -> (i32, i32) {
    %c0_i32 = arith.constant 0 : i32
    %c0_i32_0 = arith.constant 0 : i32
    %c0_i32_1 = arith.constant 0 : i32
    return %c0_i32, %c0_i32_0 : i32, i32
  }
  func.func @transform_11(%arg0: i32) -> (i32, i32) {
    %c0_i32 = arith.constant 0 : i32
    %c0_i32_0 = arith.constant 0 : i32
    %c0_i32_1 = arith.constant 0 : i32
    return %c0_i32, %c0_i32_0 : i32, i32
  }
}

</mosaic_0001>

<llo_original>
// kernel: video_encoder_forward.1
$region0: #{video_encoder_forward.1}
  #allocation0 [shape = 'u32[]', space=smem, size = 0x4, offset = 0x4, fixed_abs, tag = 'smem constant byte address 0x4 - core index']
  #allocation1 [shape = 'u32[144,128]{1,0:T(1,128)}', space=vmem, size = 0x12000, scoped, tag = 'internal scratch']
  %s0 = inlined_call_operand.vmem [shape: bf16[256,48], index: 0, kind: input, shape index: {}]
  %s1 = inlined_call_operand.vmem [shape: bf16[48,32], index: 1, kind: input, shape index: {}]
  %s2 = inlined_call_operand.vmem [shape: f32[1,32], index: 2, kind: input, shape index: {}]
  %s3 = inlined_call_operand.vmem [shape: bf16[96,32], index: 3, kind: input, shape index: {}]
  %s4 = inlined_call_operand.vmem [shape: f32[1,32], index: 4, kind: input, shape index: {}]
  %s5 = inlined_call_operand.vmem [shape: bf16[96,32], index: 5, kind: input, shape index: {}]
  %s6 = inlined_call_operand.vmem [shape: f32[1,32], index: 6, kind: input, shape index: {}]
  %s7 = inlined_call_operand.vmem [shape: bf16[96,32], index: 7, kind: input, shape index: {}]
  %s8 = inlined_call_operand.vmem [shape: f32[1,32], index: 8, kind: input, shape index: {}]
  %s9 = inlined_call_operand.vmem [shape: bf16[96,32], index: 9, kind: input, shape index: {}]
  %s10 = inlined_call_operand.vmem [shape: f32[1,32], index: 10, kind: input, shape index: {}]
  %s11 = inlined_call_operand.hbm [shape: f32[2,32], index: 11, kind: output, shape index: {}]
  %s12 = sld [smem:[#allocation0]]
  $region54: #{video_encoder_forward.1} parent=0
    _
  %s14 = ssub.s32 1, %s12
  %s15 = scalar_select 0, %s14, %s12
  $region1: #{video_encoder_forward.1} parent=0
    #allocation2 [shape = 'u8[1024]{0}', space=vmem, size = 0x400, scoped, tag = 'output window, operand 0, single buffered']
    #allocation3 [shape = 's32[1]{0}', space=sflag, size = 0x4, scoped, tag = 'scoped memory for video_encoder_forward.1']
    %16 = vsyncpa [#allocation3], 0
    // Predicated region
    $region2: #{video_encoder_forward.1} parent=1 // pred_check
      _
    $region3: #{video_encoder_forward.1} parent=1 // pred_check_branch
      %18 = sbr.rel (0) target = $region5
    $region4: #{video_encoder_forward.1} parent=1 // pred_region
      _
    $region5: #{video_encoder_forward.1} parent=1 // pred_fallthru
      _
    // Predicated region
    $region6: #{video_encoder_forward.1} parent=1 // pred_check
      _
    $region7: #{video_encoder_forward.1} parent=1 // pred_check_branch
      %20 = sbr.rel (0) target = $region9
    $region8: #{video_encoder_forward.1} parent=1 // pred_region
      _
    $region9: #{video_encoder_forward.1} parent=1 // pred_fallthru
      _
    // Predicated region
    $region10: #{video_encoder_forward.1} parent=1 // pred_check
      _
    $region11: #{video_encoder_forward.1} parent=1 // pred_check_branch
      %22 = sbr.rel (0) target = $region13
    $region12: #{video_encoder_forward.1} parent=1 // pred_region
      _
    $region13: #{video_encoder_forward.1} parent=1 // pred_fallthru
      _
    // Predicated region
    $region14: #{video_encoder_forward.1} parent=1 // pred_check
      _
    $region15: #{video_encoder_forward.1} parent=1 // pred_check_branch
      %24 = sbr.rel (0) target = $region17
    $region16: #{video_encoder_forward.1} parent=1 // pred_region
      _
    $region17: #{video_encoder_forward.1} parent=1 // pred_fallthru
      _
    // Predicated region
    $region18: #{video_encoder_forward.1} parent=1 // pred_check
      _
    $region19: #{video_encoder_forward.1} parent=1 // pred_check_branch
      %26 = sbr.rel (0) target = $region21
    $region20: #{video_encoder_forward.1} parent=1 // pred_region
      _
    $region21: #{video_encoder_forward.1} parent=1 // pred_fallthru
      _
    // Predicated region
    $region22: #{video_encoder_forward.1} parent=1 // pred_check
      _
    $region23: #{video_encoder_forward.1} parent=1 // pred_check_branch
      %28 = sbr.rel (0) target = $region25
    $region24: #{video_encoder_forward.1} parent=1 // pred_region
      _
    $region25: #{video_encoder_forward.1} parent=1 // pred_fallthru
      _
    // Predicated region
    $region26: #{video_encoder_forward.1} parent=1 // pred_check
      _
    $region27: #{video_encoder_forward.1} parent=1 // pred_check_branch
      %30 = sbr.rel (0) target = $region29
    $region28: #{video_encoder_forward.1} parent=1 // pred_region
      _
    $region29: #{video_encoder_forward.1} parent=1 // pred_fallthru
      _
    // Predicated region
    $region30: #{video_encoder_forward.1} parent=1 // pred_check
      _
    $region31: #{video_encoder_forward.1} parent=1 // pred_check_branch
      %32 = sbr.rel (0) target = $region33
    $region32: #{video_encoder_forward.1} parent=1 // pred_region
      _
    $region33: #{video_encoder_forward.1} parent=1 // pred_fallthru
      _
    // Predicated region
    $region34: #{video_encoder_forward.1} parent=1 // pred_check
      _
    $region35: #{video_encoder_forward.1} parent=1 // pred_check_branch
      %34 = sbr.rel (0) target = $region37
    $region36: #{video_encoder_forward.1} parent=1 // pred_region
      _
    $region37: #{video_encoder_forward.1} parent=1 // pred_fallthru
      _
    // Predicated region
    $region38: #{video_encoder_forward.1} parent=1 // pred_check
      _
    $region39: #{video_encoder_forward.1} parent=1 // pred_check_branch
      %36 = sbr.rel (0) target = $region41
    $region40: #{video_encoder_forward.1} parent=1 // pred_region
      _
    $region41: #{video_encoder_forward.1} parent=1 // pred_fallthru
      _
    // Predicated region
    $region42: #{video_encoder_forward.1} parent=1 // pred_check
      _
    $region43: #{video_encoder_forward.1} parent=1 // pred_check_branch
      %38 = sbr.rel (0) target = $region45
    $region44: #{video_encoder_forward.1} parent=1 // pred_region
      _
    $region45: #{video_encoder_forward.1} parent=1 // pred_fallthru
      _
    %v40 = vld [vmem:[%s0] sm:$0xf]
    %v41 = vld [vmem:[%s0 + $0x4] sm:$0xf]
    %v42 = vld [vmem:[%s0 + $0x8] sm:$0xf]
    %v43 = vld [vmem:[%s0 + $0xc] sm:$0xf]
    %v44 = vld [vmem:[%s0 + $0x10] sm:$0xf]
    %v45 = vld [vmem:[%s0 + $0x14] sm:$0xf]
    %v46 = vld [vmem:[%s0 + $0x18] sm:$0xf]
    %v47 = vld [vmem:[%s0 + $0x1c] sm:$0xf]
    %v48 = vld [vmem:[%s0 + $0x20] sm:$0xf]
    %v49 = vld [vmem:[%s0 + $0x24] sm:$0xf]
    %v50 = vld [vmem:[%s0 + $0x28] sm:$0xf]
    %v51 = vld [vmem:[%s0 + $0x2c] sm:$0xf]
    %v52 = vld [vmem:[%s0 + $0x30] sm:$0xf]
    %v53 = vld [vmem:[%s0 + $0x34] sm:$0xf]
    %v54 = vld [vmem:[%s0 + $0x38] sm:$0xf]
    %v55 = vld [vmem:[%s0 + $0x3c] sm:$0xf]
    %v56 = vld [vmem:[%s0 + $0x40] sm:$0xf]
    %v57 = vld [vmem:[%s0 + $0x44] sm:$0xf]
    %v58 = vld [vmem:[%s0 + $0x48] sm:$0xf]
    %v59 = vld [vmem:[%s0 + $0x4c] sm:$0xf]
    %v60 = vld [vmem:[%s0 + $0x50] sm:$0xf]
    %v61 = vld [vmem:[%s0 + $0x54] sm:$0xf]
    %v62 = vld [vmem:[%s0 + $0x58] sm:$0xf]
    %v63 = vld [vmem:[%s0 + $0x5c] sm:$0xf]
    %v64 = vld [vmem:[%s0 + $0x60] sm:$0xf]
    %v65 = vld [vmem:[%s0 + $0x64] sm:$0xf]
    %v66 = vld [vmem:[%s0 + $0x68] sm:$0xf]
    %v67 = vld [vmem:[%s0 + $0x6c] sm:$0xf]
    %v68 = vld [vmem:[%s0 + $0x70] sm:$0xf]
    %v69 = vld [vmem:[%s0 + $0x74] sm:$0xf]
    %v70 = vld [vmem:[%s0 + $0x78] sm:$0xf]
    %v71 = vld [vmem:[%s0 + $0x7c] sm:$0xf]
    %v72 = vld [vmem:[%s1] sm:$0xf]
    %v73 = vld [vmem:[%s1 + $0x4] sm:$0xf]
    %v74 = vld [vmem:[%s1 + $0x8] sm:$0xf]
    %v75 = vld [vmem:[%s1 + $0xc] sm:$0xf]
    %v76 = vld [vmem:[%s1 + $0x10] sm:$0xf]
    %v77 = vld [vmem:[%s1 + $0x14] sm:$0xf]
    %v78 = vld [vmem:[%s2] sm:$0x1]
    %v80 = vlaneseq
    %v81 = vshrl.u32 %v80, 7
    %v82 = vsub.s32 0, %v81
    %v83 = vrot.slane %v78, %v82
    %v117 = vunpack.c.l.b16 %v40
    %v118 = vunpack.c.l.b16 %v41
    %v119 = vunpack.c.l.b16 %v42
    %v120 = vunpack.c.l.b16 %v43
    %v121 = vunpack.c.l.b16 %v44
    %v122 = vunpack.c.l.b16 %v45
    %v123 = vunpack.c.l.b16 %v46
    %v124 = vunpack.c.l.b16 %v47
    %v125 = vunpack.c.l.b16 %v48
    %v126 = vunpack.c.l.b16 %v49
    %v127 = vunpack.c.l.b16 %v50
    %v128 = vunpack.c.l.b16 %v51
    %v129 = vunpack.c.l.b16 %v52
    %v130 = vunpack.c.l.b16 %v53
    %v131 = vunpack.c.l.b16 %v54
    %v132 = vunpack.c.l.b16 %v55
    %v133 = vunpack.c.l.b16 %v56
    %v134 = vunpack.c.l.b16 %v57
    %v135 = vunpack.c.l.b16 %v58
    %v136 = vunpack.c.l.b16 %v59
    %v137 = vunpack.c.l.b16 %v60
    %v138 = vunpack.c.l.b16 %v61
    %v139 = vunpack.c.l.b16 %v62
    %v140 = vunpack.c.l.b16 %v63
    %v141 = vunpack.c.l.b16 %v64
    %v142 = vunpack.c.l.b16 %v65
    %v143 = vunpack.c.l.b16 %v66
    %v144 = vunpack.c.l.b16 %v67
    %v145 = vunpack.c.l.b16 %v68
    %v146 = vunpack.c.l.b16 %v69
    %v147 = vunpack.c.l.b16 %v70
    %v148 = vunpack.c.l.b16 %v71
    %v149 = vpack.c.b16 %v118, %v117
    %v150 = vpack.c.b16 %v120, %v119
    %v151 = vpack.c.b16 %v122, %v121
    %v152 = vpack.c.b16 %v124, %v123
    %v153 = vpack.c.b16 %v126, %v125
    %v154 = vpack.c.b16 %v128, %v127
    %v155 = vpack.c.b16 %v130, %v129
    %v156 = vpack.c.b16 %v132, %v131
    %v157 = vpack.c.b16 %v134, %v133
    %v158 = vpack.c.b16 %v136, %v135
    %v159 = vpack.c.b16 %v138, %v137
    %v160 = vpack.c.b16 %v140, %v139
    %v161 = vpack.c.b16 %v142, %v141
    %v162 = vpack.c.b16 %v144, %v143
    %v163 = vpack.c.b16 %v146, %v145
    %v164 = vpack.c.b16 %v148, %v147
    %v171 = vunpack.c.l.b16 %v72
    %v172 = vunpack.c.l.b16 %v73
    %v173 = vunpack.c.l.b16 %v74
    %v174 = vunpack.c.l.b16 %v75
    %v175 = vunpack.c.l.b16 %v76
    %v176 = vunpack.c.l.b16 %v77
    %v177 = vpack.c.b16 %v172, %v171
    %v178 = vpack.c.b16 %v174, %v173
    %v179 = vpack.c.b16 %v176, %v175
    %vm183 = vcmask 392192
    %v185 = vsel %vm183, %v149, 0
    %v188 = vsel %vm183, %v150, 0
    %v191 = vsel %vm183, %v151, 0
    %v194 = vsel %vm183, %v152, 0
    %v197 = vsel %vm183, %v153, 0
    %v200 = vsel %vm183, %v154, 0
    %v203 = vsel %vm183, %v155, 0
    %v206 = vsel %vm183, %v156, 0
    %v209 = vsel %vm183, %v157, 0
    %v212 = vsel %vm183, %v158, 0
    %v215 = vsel %vm183, %v159, 0
    %v218 = vsel %vm183, %v160, 0
    %v221 = vsel %vm183, %v161, 0
    %v224 = vsel %vm183, %v162, 0
    %v227 = vsel %vm183, %v163, 0
    %v230 = vsel %vm183, %v164, 0
    %232 = vmatprep.subr.bf16.mxu0 0
    %233 = vmatpush1.bf16.msra.mxu0 0
    %234 = vmatprep.subr.bf16.mxu0 0
    %235 = vmatpush1.bf16.msra.mxu0 0
    %236 = vmatprep.subr.bf16.mxu0 0
    %237 = vmatpush1.bf16.msra.mxu0 0
    %238 = vmatprep.subr.bf16.mxu0 0
    %239 = vmatpush1.bf16.msra.mxu0 0
    %240 = vmatprep.subr.bf16.mxu0 0
    %241 = vmatpush1.bf16.msra.mxu0 0
    %242 = vmatprep.subr.bf16.mxu0 0
    %243 = vmatpush1.bf16.msra.mxu0 %v179
    %244 = vmatprep.subr.bf16.mxu0 0
    %245 = vmatpush1.bf16.msra.mxu0 %v178
    %246 = vmatprep.subr.bf16.mxu0 0
    %247 = vmatpush1.bf16.msra.mxu0 %v177
    %248 = vmatprep.subr.bf16.mxu0 0
    %249 = vmatpush2.bf16.msra.mxu0 0
    %250 = vmatprep.subr.bf16.mxu0 0
    %251 = vmatpush2.bf16.msra.mxu0 0
    %252 = vmatprep.subr.bf16.mxu0 0
    %253 = vmatpush2.bf16.msra.mxu0 0
    %254 = vmatprep.subr.bf16.mxu0 0
    %255 = vmatpush2.bf16.msra.mxu0 0
    %256 = vmatprep.subr.bf16.mxu0 0
    %257 = vmatpush2.bf16.msra.mxu0 0
    %258 = vmatprep.subr.bf16.mxu0 0
    %259 = vmatpush2.bf16.msra.mxu0 0
    %260 = vmatprep.subr.bf16.mxu0 0
    %261 = vmatpush2.bf16.msra.mxu0 0
    %262 = vmatprep.subr.bf16.mxu0 0
    %263 = vmatpush2.bf16.msra.mxu0 0
    %264 = vmatprep.mubr.bf16.mxu0 0
    %265 = vmatmul.mubr.bf16.gmra.mxu0 %v185
    %v266 = vpop.f32.mrf.mxu0
    %v267 = vadd.f32 %v83, %v266
    %v268 = vpop.f32.mrf.mxu0
    %v269 = vpop.f32.mrf.mxu0
    %v270 = vadd.f32 %v83, %v269
    %v271 = vpop.f32.mrf.mxu0
    %272 = vmatprep.mubr.bf16.mxu0 0
    %273 = vmatmul.mubr.bf16.gmra.mxu0 %v188
    %v274 = vpop.f32.mrf.mxu0
    %v275 = vadd.f32 %v83, %v274
    %v276 = vpop.f32.mrf.mxu0
    %v277 = vpop.f32.mrf.mxu0
    %v278 = vadd.f32 %v83, %v277
    %v279 = vpop.f32.mrf.mxu0
    %280 = vmatprep.mubr.bf16.mxu0 0
    %281 = vmatmul.mubr.bf16.gmra.mxu0 %v191
    %v282 = vpop.f32.mrf.mxu0
    %v283 = vadd.f32 %v83, %v282
    %v284 = vpop.f32.mrf.mxu0
    %v285 = vpop.f32.mrf.mxu0
    %v286 = vadd.f32 %v83, %v285
    %v287 = vpop.f32.mrf.mxu0
    %288 = vmatprep.mubr.bf16.mxu0 0
    %289 = vmatmul.mubr.bf16.gmra.mxu0 %v194
    %v290 = vpop.f32.mrf.mxu0
    %v291 = vadd.f32 %v83, %v290
    %v292 = vpop.f32.mrf.mxu0
    %v293 = vpop.f32.mrf.mxu0
    %v294 = vadd.f32 %v83, %v293
    %v295 = vpop.f32.mrf.mxu0
    %296 = vmatprep.mubr.bf16.mxu0 0
    %297 = vmatmul.mubr.bf16.gmra.mxu0 %v197
    %v298 = vpop.f32.mrf.mxu0
    %v299 = vadd.f32 %v83, %v298
    %v300 = vpop.f32.mrf.mxu0
    %v301 = vpop.f32.mrf.mxu0
    %v302 = vadd.f32 %v83, %v301
    %v303 = vpop.f32.mrf.mxu0
    %304 = vmatprep.mubr.bf16.mxu0 0
    %305 = vmatmul.mubr.bf16.gmra.mxu0 %v200
    %v306 = vpop.f32.mrf.mxu0
    %v307 = vadd.f32 %v83, %v306
    %v308 = vpop.f32.mrf.mxu0
    %v309 = vpop.f32.mrf.mxu0
    %v310 = vadd.f32 %v83, %v309
    %v311 = vpop.f32.mrf.mxu0
    %312 = vmatprep.mubr.bf16.mxu0 0
    %313 = vmatmul.mubr.bf16.gmra.mxu0 %v203
    %v314 = vpop.f32.mrf.mxu0
    %v315 = vadd.f32 %v83, %v314
    %v316 = vpop.f32.mrf.mxu0
    %v317 = vpop.f32.mrf.mxu0
    %v318 = vadd.f32 %v83, %v317
    %v319 = vpop.f32.mrf.mxu0
    %320 = vmatprep.mubr.bf16.mxu0 0
    %321 = vmatmul.mubr.bf16.gmra.mxu0 %v206
    %v322 = vpop.f32.mrf.mxu0
    %v323 = vadd.f32 %v83, %v322
    %v324 = vpop.f32.mrf.mxu0
    %v325 = vpop.f32.mrf.mxu0
    %v326 = vadd.f32 %v83, %v325
    %v327 = vpop.f32.mrf.mxu0
    %328 = vmatprep.mubr.bf16.mxu0 0
    %329 = vmatmul.mubr.bf16.gmra.mxu0 %v209
    %v330 = vpop.f32.mrf.mxu0
    %v331 = vadd.f32 %v83, %v330
    %v332 = vpop.f32.mrf.mxu0
    %v333 = vpop.f32.mrf.mxu0
    %v334 = vadd.f32 %v83, %v333
    %v335 = vpop.f32.mrf.mxu0
    %336 = vmatprep.mubr.bf16.mxu0 0
    %337 = vmatmul.mubr.bf16.gmra.mxu0 %v212
    %v338 = vpop.f32.mrf.mxu0
    %v339 = vadd.f32 %v83, %v338
    %v340 = vpop.f32.mrf.mxu0
    %v341 = vpop.f32.mrf.mxu0
    %v342 = vadd.f32 %v83, %v341
    %v343 = vpop.f32.mrf.mxu0
    %344 = vmatprep.mubr.bf16.mxu0 0
    %345 = vmatmul.mubr.bf16.gmra.mxu0 %v215
    %v346 = vpop.f32.mrf.mxu0
    %v347 = vadd.f32 %v83, %v346
    %v348 = vpop.f32.mrf.mxu0
    %v349 = vpop.f32.mrf.mxu0
    %v350 = vadd.f32 %v83, %v349
    %v351 = vpop.f32.mrf.mxu0
    %352 = vmatprep.mubr.bf16.mxu0 0
    %353 = vmatmul.mubr.bf16.gmra.mxu0 %v218
    %v354 = vpop.f32.mrf.mxu0
    %v355 = vadd.f32 %v83, %v354
    %v356 = vpop.f32.mrf.mxu0
    %v357 = vpop.f32.mrf.mxu0
    %v358 = vadd.f32 %v83, %v357
    %v359 = vpop.f32.mrf.mxu0
    %360 = vmatprep.mubr.bf16.mxu0 0
    %361 = vmatmul.mubr.bf16.gmra.mxu0 %v221
    %v362 = vpop.f32.mrf.mxu0
    %v363 = vadd.f32 %v83, %v362
    %v364 = vpop.f32.mrf.mxu0
    %v365 = vpop.f32.mrf.mxu0
    %v366 = vadd.f32 %v83, %v365
    %v367 = vpop.f32.mrf.mxu0
    %368 = vmatprep.mubr.bf16.mxu0 0
    %369 = vmatmul.mubr.bf16.gmra.mxu0 %v224
    %v370 = vpop.f32.mrf.mxu0
    %v371 = vadd.f32 %v83, %v370
    %v372 = vpop.f32.mrf.mxu0
    %v373 = vpop.f32.mrf.mxu0
    %v374 = vadd.f32 %v83, %v373
    %v375 = vpop.f32.mrf.mxu0
    %376 = vmatprep.mubr.bf16.mxu0 0
    %377 = vmatmul.mubr.bf16.gmra.mxu0 %v227
    %v378 = vpop.f32.mrf.mxu0
    %v379 = vadd.f32 %v83, %v378
    %v380 = vpop.f32.mrf.mxu0
    %v381 = vpop.f32.mrf.mxu0
    %v382 = vadd.f32 %v83, %v381
    %v383 = vpop.f32.mrf.mxu0
    %384 = vmatprep.mubr.bf16.mxu0 0
    %385 = vmatmul.mubr.bf16.gmra.mxu0 %v230
    %v386 = vpop.f32.mrf.mxu0
    %v387 = vadd.f32 %v83, %v386
    %v388 = vpop.f32.mrf.mxu0
    %v389 = vpop.f32.mrf.mxu0
    %v390 = vadd.f32 %v83, %v389
    %v391 = vpop.f32.mrf.mxu0
    %392 = vdwg.mxu0
    %v393 = vmul.f32 %v267, %v267
    %v394 = vmul.f32 %v270, %v270
    %v395 = vmul.f32 %v275, %v275
    %v396 = vmul.f32 %v278, %v278
    %v397 = vmul.f32 %v283, %v283
    %v398 = vmul.f32 %v286, %v286
    %v399 = vmul.f32 %v291, %v291
    %v400 = vmul.f32 %v294, %v294
    %v401 = vmul.f32 %v299, %v299
    %v402 = vmul.f32 %v302, %v302
    %v403 = vmul.f32 %v307, %v307
    %v404 = vmul.f32 %v310, %v310
    %v405 = vmul.f32 %v315, %v315
    %v406 = vmul.f32 %v318, %v318
    %v407 = vmul.f32 %v323, %v323
    %v408 = vmul.f32 %v326, %v326
    %v409 = vmul.f32 %v331, %v331
    %v410 = vmul.f32 %v334, %v334
    %v411 = vmul.f32 %v339, %v339
    %v412 = vmul.f32 %v342, %v342
    %v413 = vmul.f32 %v347, %v347
    %v414 = vmul.f32 %v350, %v350
    %v415 = vmul.f32 %v355, %v355
    %v416 = vmul.f32 %v358, %v358
    %v417 = vmul.f32 %v363, %v363
    %v418 = vmul.f32 %v366, %v366
    %v419 = vmul.f32 %v371, %v371
    %v420 = vmul.f32 %v374, %v374
    %v421 = vmul.f32 %v379, %v379
    %v422 = vmul.f32 %v382, %v382
    %v423 = vmul.f32 %v387, %v387
    %v424 = vmul.f32 %v390, %v390
    %v425 = vmul.f32 %v267, %v393
    %v426 = vmul.f32 %v270, %v394
    %v427 = vmul.f32 %v275, %v395
    %v428 = vmul.f32 %v278, %v396
    %v429 = vmul.f32 %v283, %v397
    %v430 = vmul.f32 %v286, %v398
    %v431 = vmul.f32 %v291, %v399
    %v432 = vmul.f32 %v294, %v400
    %v433 = vmul.f32 %v299, %v401
    %v434 = vmul.f32 %v302, %v402
    %v435 = vmul.f32 %v307, %v403
    %v436 = vmul.f32 %v310, %v404
    %v437 = vmul.f32 %v315, %v405
    %v438 = vmul.f32 %v318, %v406
    %v439 = vmul.f32 %v323, %v407
    %v440 = vmul.f32 %v326, %v408
    %v441 = vmul.f32 %v331, %v409
    %v442 = vmul.f32 %v334, %v410
    %v443 = vmul.f32 %v339, %v411
    %v444 = vmul.f32 %v342, %v412
    %v445 = vmul.f32 %v347, %v413
    %v446 = vmul.f32 %v350, %v414
    %v447 = vmul.f32 %v355, %v415
    %v448 = vmul.f32 %v358, %v416
    %v449 = vmul.f32 %v363, %v417
    %v450 = vmul.f32 %v366, %v418
    %v451 = vmul.f32 %v371, %v419
    %v452 = vmul.f32 %v374, %v420
    %v453 = vmul.f32 %v379, %v421
    %v454 = vmul.f32 %v382, %v422
    %v455 = vmul.f32 %v387, %v423
    %v456 = vmul.f32 %v390, %v424
    %v457 = vmul.f32 %v425, 0.044715
    %v458 = vmul.f32 %v426, 0.044715
    %v459 = vmul.f32 %v427, 0.044715
    %v460 = vmul.f32 %v428, 0.044715
    %v461 = vmul.f32 %v429, 0.044715
    %v462 = vmul.f32 %v430, 0.044715
    %v463 = vmul.f32 %v431, 0.044715
    %v464 = vmul.f32 %v432, 0.044715
    %v465 = vmul.f32 %v433, 0.044715
    %v466 = vmul.f32 %v434, 0.044715
    %v467 = vmul.f32 %v435, 0.044715
    %v468 = vmul.f32 %v436, 0.044715
    %v469 = vmul.f32 %v437, 0.044715
    %v470 = vmul.f32 %v438, 0.044715
    %v471 = vmul.f32 %v439, 0.044715
    %v472 = vmul.f32 %v440, 0.044715
    %v473 = vmul.f32 %v441, 0.044715
    %v474 = vmul.f32 %v442, 0.044715
    %v475 = vmul.f32 %v443, 0.044715
    %v476 = vmul.f32 %v444, 0.044715
    %v477 = vmul.f32 %v445, 0.044715
    %v478 = vmul.f32 %v446, 0.044715
    %v479 = vmul.f32 %v447, 0.044715
    %v480 = vmul.f32 %v448, 0.044715
    %v481 = vmul.f32 %v449, 0.044715
    %v482 = vmul.f32 %v450, 0.044715
    %v483 = vmul.f32 %v451, 0.044715
    %v484 = vmul.f32 %v452, 0.044715
    %v485 = vmul.f32 %v453, 0.044715
    %v486 = vmul.f32 %v454, 0.044715
    %v487 = vmul.f32 %v455, 0.044715
    %v488 = vmul.f32 %v456, 0.044715
    %v489 = vadd.f32 %v267, %v457
    %v490 = vadd.f32 %v270, %v458
    %v491 = vadd.f32 %v275, %v459
    %v492 = vadd.f32 %v278, %v460
    %v493 = vadd.f32 %v283, %v461
    %v494 = vadd.f32 %v286, %v462
    %v495 = vadd.f32 %v291, %v463
    %v496 = vadd.f32 %v294, %v464
    %v497 = vadd.f32 %v299, %v465
    %v498 = vadd.f32 %v302, %v466
    %v499 = vadd.f32 %v307, %v467
    %v500 = vadd.f32 %v310, %v468
    %v501 = vadd.f32 %v315, %v469
    %v502 = vadd.f32 %v318, %v470
    %v503 = vadd.f32 %v323, %v471
    %v504 = vadd.f32 %v326, %v472
    %v505 = vadd.f32 %v331, %v473
    %v506 = vadd.f32 %v334, %v474
    %v507 = vadd.f32 %v339, %v475
    %v508 = vadd.f32 %v342, %v476
    %v509 = vadd.f32 %v347, %v477
    %v510 = vadd.f32 %v350, %v478
    %v511 = vadd.f32 %v355, %v479
    %v512 = vadd.f32 %v358, %v480
    %v513 = vadd.f32 %v363, %v481
    %v514 = vadd.f32 %v366, %v482
    %v515 = vadd.f32 %v371, %v483
    %v516 = vadd.f32 %v374, %v484
    %v517 = vadd.f32 %v379, %v485
    %v518 = vadd.f32 %v382, %v486
    %v519 = vadd.f32 %v387, %v487
    %v520 = vadd.f32 %v390, %v488
    %v521 = vmul.f32 %v489, 0.7978846
    %v522 = vmul.f32 %v490, 0.7978846
    %v523 = vmul.f32 %v491, 0.7978846
    %v524 = vmul.f32 %v492, 0.7978846
    %v525 = vmul.f32 %v493, 0.7978846
    %v526 = vmul.f32 %v494, 0.7978846
    %v527 = vmul.f32 %v495, 0.7978846
    %v528 = vmul.f32 %v496, 0.7978846
    %v529 = vmul.f32 %v497, 0.7978846
    %v530 = vmul.f32 %v498, 0.7978846
    %v531 = vmul.f32 %v499, 0.7978846
    %v532 = vmul.f32 %v500, 0.7978846
    %v533 = vmul.f32 %v501, 0.7978846
    %v534 = vmul.f32 %v502, 0.7978846
    %v535 = vmul.f32 %v503, 0.7978846
    %v536 = vmul.f32 %v504, 0.7978846
    %v537 = vmul.f32 %v505, 0.7978846
    %v538 = vmul.f32 %v506, 0.7978846
    %v539 = vmul.f32 %v507, 0.7978846
    %v540 = vmul.f32 %v508, 0.7978846
    %v541 = vmul.f32 %v509, 0.7978846
    %v542 = vmul.f32 %v510, 0.7978846
    %v543 = vmul.f32 %v511, 0.7978846
    %v544 = vmul.f32 %v512, 0.7978846
    %v545 = vmul.f32 %v513, 0.7978846
    %v546 = vmul.f32 %v514, 0.7978846
    %v547 = vmul.f32 %v515, 0.7978846
    %v548 = vmul.f32 %v516, 0.7978846
    %v549 = vmul.f32 %v517, 0.7978846
    %v550 = vmul.f32 %v518, 0.7978846
    %v551 = vmul.f32 %v519, 0.7978846
    %v552 = vmul.f32 %v520, 0.7978846
    %v553 = vtanh.pop %v521
    %v554 = vtanh.pop %v522
    %v555 = vtanh.pop %v523
    %v556 = vtanh.pop %v524
    %v557 = vtanh.pop %v525
    %v558 = vtanh.pop %v526
    %v559 = vtanh.pop %v527
    %v560 = vtanh.pop %v528
    %v561 = vtanh.pop %v529
    %v562 = vtanh.pop %v530
    %v563 = vtanh.pop %v531
    %v564 = vtanh.pop %v532
    %v565 = vtanh.pop %v533
    %v566 = vtanh.pop %v534
    %v567 = vtanh.pop %v535
    %v568 = vtanh.pop %v536
    %v569 = vtanh.pop %v537
    %v570 = vtanh.pop %v538
    %v571 = vtanh.pop %v539
    %v572 = vtanh.pop %v540
    %v573 = vtanh.pop %v541
    %v574 = vtanh.pop %v542
    %v575 = vtanh.pop %v543
    %v576 = vtanh.pop %v544
    %v577 = vtanh.pop %v545
    %v578 = vtanh.pop %v546
    %v579 = vtanh.pop %v547
    %v580 = vtanh.pop %v548
    %v581 = vtanh.pop %v549
    %v582 = vtanh.pop %v550
    %v583 = vtanh.pop %v551
    %v584 = vtanh.pop %v552
    %v585 = vadd.f32 %v553, 1.0
    %v586 = vadd.f32 %v554, 1.0
    %v587 = vadd.f32 %v555, 1.0
    %v588 = vadd.f32 %v556, 1.0
    %v589 = vadd.f32 %v557, 1.0
    %v590 = vadd.f32 %v558, 1.0
    %v591 = vadd.f32 %v559, 1.0
    %v592 = vadd.f32 %v560, 1.0
    %v593 = vadd.f32 %v561, 1.0
    %v594 = vadd.f32 %v562, 1.0
    %v595 = vadd.f32 %v563, 1.0
    %v596 = vadd.f32 %v564, 1.0
    %v597 = vadd.f32 %v565, 1.0
    %v598 = vadd.f32 %v566, 1.0
    %v599 = vadd.f32 %v567, 1.0
    %v600 = vadd.f32 %v568, 1.0
    %v601 = vadd.f32 %v569, 1.0
    %v602 = vadd.f32 %v570, 1.0
    %v603 = vadd.f32 %v571, 1.0
    %v604 = vadd.f32 %v572, 1.0
    %v605 = vadd.f32 %v573, 1.0
    %v606 = vadd.f32 %v574, 1.0
    %v607 = vadd.f32 %v575, 1.0
    %v608 = vadd.f32 %v576, 1.0
    %v609 = vadd.f32 %v577, 1.0
    %v610 = vadd.f32 %v578, 1.0
    %v611 = vadd.f32 %v579, 1.0
    %v612 = vadd.f32 %v580, 1.0
    %v613 = vadd.f32 %v581, 1.0
    %v614 = vadd.f32 %v582, 1.0
    %v615 = vadd.f32 %v583, 1.0
    %v616 = vadd.f32 %v584, 1.0
    %v617 = vmul.f32 %v585, 0.5
    %v618 = vmul.f32 %v586, 0.5
    %v619 = vmul.f32 %v587, 0.5
    %v620 = vmul.f32 %v588, 0.5
    %v621 = vmul.f32 %v589, 0.5
    %v622 = vmul.f32 %v590, 0.5
    %v623 = vmul.f32 %v591, 0.5
    %v624 = vmul.f32 %v592, 0.5
    %v625 = vmul.f32 %v593, 0.5
    %v626 = vmul.f32 %v594, 0.5
    %v627 = vmul.f32 %v595, 0.5
    %v628 = vmul.f32 %v596, 0.5
    %v629 = vmul.f32 %v597, 0.5
    %v630 = vmul.f32 %v598, 0.5
    %v631 = vmul.f32 %v599, 0.5
    %v632 = vmul.f32 %v600, 0.5
    %v633 = vmul.f32 %v601, 0.5
    %v634 = vmul.f32 %v602, 0.5
    %v635 = vmul.f32 %v603, 0.5
    %v636 = vmul.f32 %v604, 0.5
    %v637 = vmul.f32 %v605, 0.5
    %v638 = vmul.f32 %v606, 0.5
    %v639 = vmul.f32 %v607, 0.5
    %v640 = vmul.f32 %v608, 0.5
    %v641 = vmul.f32 %v609, 0.5
    %v642 = vmul.f32 %v610, 0.5
    %v643 = vmul.f32 %v611, 0.5
    %v644 = vmul.f32 %v612, 0.5
    %v645 = vmul.f32 %v613, 0.5
    %v646 = vmul.f32 %v614, 0.5
    %v647 = vmul.f32 %v615, 0.5
    %v648 = vmul.f32 %v616, 0.5
    %v649 = vmul.f32 %v267, %v617
    %v650 = vmul.f32 %v270, %v618
    %v651 = vmul.f32 %v275, %v619
    %v652 = vmul.f32 %v278, %v620
    %v653 = vmul.f32 %v283, %v621
    %v654 = vmul.f32 %v286, %v622
    %v655 = vmul.f32 %v291, %v623
    %v656 = vmul.f32 %v294, %v624
    %v657 = vmul.f32 %v299, %v625
    %v658 = vmul.f32 %v302, %v626
    %v659 = vmul.f32 %v307, %v627
    %v660 = vmul.f32 %v310, %v628
    %v661 = vmul.f32 %v315, %v629
    %v662 = vmul.f32 %v318, %v630
    %v663 = vmul.f32 %v323, %v631
    %v664 = vmul.f32 %v326, %v632
    %v665 = vmul.f32 %v331, %v633
    %v666 = vmul.f32 %v334, %v634
    %v667 = vmul.f32 %v339, %v635
    %v668 = vmul.f32 %v342, %v636
    %v669 = vmul.f32 %v347, %v637
    %v670 = vmul.f32 %v350, %v638
    %v671 = vmul.f32 %v355, %v639
    %v672 = vmul.f32 %v358, %v640
    %v673 = vmul.f32 %v363, %v641
    %v674 = vmul.f32 %v366, %v642
    %v675 = vmul.f32 %v371, %v643
    %v676 = vmul.f32 %v374, %v644
    %v677 = vmul.f32 %v379, %v645
    %v678 = vmul.f32 %v382, %v646
    %v679 = vmul.f32 %v387, %v647
    %v680 = vmul.f32 %v390, %v648
    %v681 = vlaneseq
    %v682 = vshrl.u32 %v681, 7
    %v683 = vadd.s32 %v682, 8
    %v684 = vlaneseq
    %v685 = vand.u32 %v684, 127
    %v686 = vadd.s32 %v685, 128
    %v687 = vmul.u32 %v682, 16
    %v688 = vmul.u32 %v683, 16
    %vm689 = vcmp.ge.s32.totalorder %v685, %v687
    %vm690 = vcmp.ge.s32.totalorder %v686, %v687
    %vm691 = vcmp.ge.s32.totalorder %v685, %v688
    %vm692 = vcmp.ge.s32.totalorder %v686, %v688
    %v693 = vadd.s32 %v687, 16
    %v694 = vadd.s32 %v688, 16
    %vm695 = vcmp.lt.s32.totalorder %v685, %v693
    %vm696 = vcmp.lt.s32.totalorder %v686, %v693
    %vm697 = vcmp.lt.s32.totalorder %v685, %v694
    %vm698 = vcmp.lt.s32.totalorder %v686, %v694
    %vm699 = vmand %vm689, %vm695
    %vm700 = vmand %vm690, %vm696
    %vm701 = vmand %vm691, %vm697
    %vm702 = vmand %vm692, %vm698
    %v703 = vsel %vm699, 0.0625, 0.0
    %v704 = vsel %vm700, 0.0625, 0.0
    %v705 = vsel %vm701, 0.0625, 0.0
    %v706 = vsel %vm702, 0.0625, 0.0
    %v707 = vpack.c.bf16 %v705, %v703
    %v708 = vpack.c.bf16 %v706, %v704
    %v709 = vpack.c.bf16 %v650, %v649
    %v710 = vpack.c.bf16 %v652, %v651
    %v711 = vpack.c.bf16 %v654, %v653
    %v712 = vpack.c.bf16 %v656, %v655
    %v713 = vpack.c.bf16 %v658, %v657
    %v714 = vpack.c.bf16 %v660, %v659
    %v715 = vpack.c.bf16 %v662, %v661
    %v716 = vpack.c.bf16 %v664, %v663
    %v717 = vpack.c.bf16 %v666, %v665
    %v718 = vpack.c.bf16 %v668, %v667
    %v719 = vpack.c.bf16 %v670, %v669
    %v720 = vpack.c.bf16 %v672, %v671
    %v721 = vpack.c.bf16 %v674, %v673
    %v722 = vpack.c.bf16 %v676, %v675
    %v723 = vpack.c.bf16 %v678, %v677
    %v724 = vpack.c.bf16 %v680, %v679
    %725 = vmatprep.subr.bf16.mxu0 0
    %726 = vmatpush1.bf16.msra.mxu0 %v716
    %727 = vmatprep.subr.bf16.mxu0 0
    %728 = vmatpush1.bf16.msra.mxu0 %v715
    %729 = vmatprep.subr.bf16.mxu0 0
    %730 = vmatpush1.bf16.msra.mxu0 %v714
    %731 = vmatprep.subr.bf16.mxu0 0
    %732 = vmatpush1.bf16.msra.mxu0 %v713
    %733 = vmatprep.subr.bf16.mxu0 0
    %734 = vmatpush1.bf16.msra.mxu0 %v712
    %735 = vmatprep.subr.bf16.mxu0 0
    %736 = vmatpush1.bf16.msra.mxu0 %v711
    %737 = vmatprep.subr.bf16.mxu0 0
    %738 = vmatpush1.bf16.msra.mxu0 %v710
    %739 = vmatprep.subr.bf16.mxu0 0
    %740 = vmatpush1.bf16.msra.mxu0 %v709
    %741 = vmatprep.subr.bf16.mxu0 0
    %742 = vmatpush2.bf16.msra.mxu0 %v724
    %743 = vmatprep.subr.bf16.mxu0 0
    %744 = vmatpush2.bf16.msra.mxu0 %v723
    %745 = vmatprep.subr.bf16.mxu0 0
    %746 = vmatpush2.bf16.msra.mxu0 %v722
    %747 = vmatprep.subr.bf16.mxu0 0
    %748 = vmatpush2.bf16.msra.mxu0 %v721
    %749 = vmatprep.subr.bf16.mxu0 0
    %750 = vmatpush2.bf16.msra.mxu0 %v720
    %751 = vmatprep.subr.bf16.mxu0 0
    %752 = vmatpush2.bf16.msra.mxu0 %v719
    %753 = vmatprep.subr.bf16.mxu0 0
    %754 = vmatpush2.bf16.msra.mxu0 %v718
    %755 = vmatprep.subr.bf16.mxu0 0
    %756 = vmatpush2.bf16.msra.mxu0 %v717
    %757 = vmatprep.mubr.bf16.mxu0 %v708
    %758 = vmatmul.mubr.bf16.gmra.mxu0 %v707
    %v759 = vpop.f32.mrf.mxu0
    %v760 = vadd.f32 0.0, %v759
    %v761 = vpop.f32.mrf.mxu0
    %v762 = vpop.f32.mrf.mxu0
    %v763 = vadd.f32 0.0, %v762
    %v764 = vpop.f32.mrf.mxu0
    %765 = vdwg.mxu0
    %v766 = vrot.slane %v760, 6
    %v767 = vrot.slane %v763, 6
    %vm768 = vcmp.lt.s32.totalorder %v682, 2
    %v769 = vsel %vm768, %v766, %v767
    %v770 = vsel %vm768, %v767, %v766
    %vm771 = vcmp.lt.s32.totalorder %v682, 0
    %vm772 = vcmp.lt.s32.totalorder %v683, 0
    %vm773 = vcmp.ge.s32.totalorder %v682, 2
    %vm774 = vcmp.ge.s32.totalorder %v683, 2
    %vm775 = vmor %vm771, %vm773
    %vm776 = vmor %vm772, %vm774
    %vm777 = vcmp.lt.s32.totalorder %v682, 8
    %vm778 = vcmp.lt.s32.totalorder %v683, 8
    %vm779 = vcmp.ge.s32.totalorder %v682, 10
    %vm780 = vcmp.ge.s32.totalorder %v683, 10
    %vm781 = vmor %vm777, %vm779
    %vm782 = vmor %vm778, %vm780
    %vm783 = vmand %vm775, %vm781
    %vm784 = vmand %vm776, %vm782
    %v785 = vsel %vm783, 1.0, 0.0
    %v786 = vsel %vm784, 1.0, 0.0
    %v787 = vmul.f32 %v770, %v785
    %v788 = vmul.f32 %v769, %v786
    %v789 = vpack.c.bf16 %v788, %v787
    %v790 = vld [vmem:[%s3] sm:$0xf]
    %v791 = vld [vmem:[%s3 + $0x4] sm:$0xf]
    %v792 = vld [vmem:[%s3 + $0x8] sm:$0xf]
    %v793 = vld [vmem:[%s3 + $0xc] sm:$0xf]
    %v794 = vrot.slane %v760, 7
    %v795 = vrot.slane %v763, 7
    %vm796 = vcmp.lt.s32.totalorder %v682, 1
    %v797 = vsel %vm796, %v794, %v795
    %v798 = vsel %vm796, %v795, %v794
    %vm799 = vcmp.ge.s32.totalorder %v682, 1
    %vm800 = vcmp.ge.s32.totalorder %v683, 1
    %vm801 = vmor %vm771, %vm799
    %vm802 = vmor %vm772, %vm800
    %vm803 = vcmp.ge.s32.totalorder %v682, 9
    %vm804 = vcmp.ge.s32.totalorder %v683, 9
    %vm805 = vmor %vm777, %vm803
    %vm806 = vmor %vm778, %vm804
    %vm807 = vmand %vm801, %vm805
    %vm808 = vmand %vm802, %vm806
    %v809 = vsel %vm807, 1.0, 0.0
    %v810 = vsel %vm808, 1.0, 0.0
    %v811 = vmul.f32 %v798, %v809
    %v812 = vmul.f32 %v797, %v810
    %v813 = vpack.c.bf16 %v812, %v811
    %v814 = vld [vmem:[%s3 + $0x10] sm:$0xf]
    %v815 = vld [vmem:[%s3 + $0x14] sm:$0xf]
    %v816 = vld [vmem:[%s3 + $0x18] sm:$0xf]
    %v817 = vld [vmem:[%s3 + $0x1c] sm:$0xf]
    %v822 = vunpack.c.l.b16 %v814
    %v823 = vunpack.c.l.b16 %v815
    %v824 = vunpack.c.l.b16 %v816
    %v825 = vunpack.c.l.b16 %v817
    %v826 = vpack.c.b16 %v823, %v822
    %v827 = vpack.c.b16 %v825, %v824
    %vm830 = vcmask 261120
    %v832 = vsel %vm830, %v813, 0
    %834 = vmatprep.subr.bf16.mxu0 0
    %835 = vmatpush1.bf16.msra.mxu0 0
    %836 = vmatprep.subr.bf16.mxu0 0
    %837 = vmatpush1.bf16.msra.mxu0 0
    %838 = vmatprep.subr.bf16.mxu0 0
    %839 = vmatpush1.bf16.msra.mxu0 0
    %840 = vmatprep.subr.bf16.mxu0 0
    %841 = vmatpush1.bf16.msra.mxu0 0
    %842 = vmatprep.subr.bf16.mxu0 0
    %843 = vmatpush1.bf16.msra.mxu0 0
    %844 = vmatprep.subr.bf16.mxu0 0
    %845 = vmatpush1.bf16.msra.mxu0 0
    %846 = vmatprep.subr.bf16.mxu0 0
    %847 = vmatpush1.bf16.msra.mxu0 %v827
    %848 = vmatprep.subr.bf16.mxu0 0
    %849 = vmatpush1.bf16.msra.mxu0 %v826
    %850 = vmatprep.subr.bf16.mxu0 0
    %851 = vmatpush2.bf16.msra.mxu0 0
    %852 = vmatprep.subr.bf16.mxu0 0
    %853 = vmatpush2.bf16.msra.mxu0 0
    %854 = vmatprep.subr.bf16.mxu0 0
    %855 = vmatpush2.bf16.msra.mxu0 0
    %856 = vmatprep.subr.bf16.mxu0 0
    %857 = vmatpush2.bf16.msra.mxu0 0
    %858 = vmatprep.subr.bf16.mxu0 0
    %859 = vmatpush2.bf16.msra.mxu0 0
    %860 = vmatprep.subr.bf16.mxu0 0
    %861 = vmatpush2.bf16.msra.mxu0 0
    %862 = vmatprep.subr.bf16.mxu0 0
    %863 = vmatpush2.bf16.msra.mxu0 0
    %864 = vmatprep.subr.bf16.mxu0 0
    %865 = vmatpush2.bf16.msra.mxu0 0
    %866 = vmatprep.mubr.bf16.mxu0 0
    %867 = vmatmul.mubr.bf16.gmra.mxu0 %v832
    %v868 = vpop.f32.mrf.mxu0
    %v869 = vadd.f32 0.0, %v868
    %v870 = vpop.f32.mrf.mxu0
    %v871 = vpop.f32.mrf.mxu0
    %v872 = vadd.f32 0.0, %v871
    %v873 = vpop.f32.mrf.mxu0
    %874 = vdwg.mxu0
    %v879 = vunpack.c.l.b16 %v790
    %v880 = vunpack.c.l.b16 %v791
    %v881 = vunpack.c.l.b16 %v792
    %v882 = vunpack.c.l.b16 %v793
    %v883 = vpack.c.b16 %v880, %v879
    %v884 = vpack.c.b16 %v882, %v881
    %v888 = vsel %vm830, %v789, 0
    %890 = vmatprep.subr.bf16.mxu0 0
    %891 = vmatpush1.bf16.msra.mxu0 0
    %892 = vmatprep.subr.bf16.mxu0 0
    %893 = vmatpush1.bf16.msra.mxu0 0
    %894 = vmatprep.subr.bf16.mxu0 0
    %895 = vmatpush1.bf16.msra.mxu0 0
    %896 = vmatprep.subr.bf16.mxu0 0
    %897 = vmatpush1.bf16.msra.mxu0 0
    %898 = vmatprep.subr.bf16.mxu0 0
    %899 = vmatpush1.bf16.msra.mxu0 0
    %900 = vmatprep.subr.bf16.mxu0 0
    %901 = vmatpush1.bf16.msra.mxu0 0
    %902 = vmatprep.subr.bf16.mxu0 0
    %903 = vmatpush1.bf16.msra.mxu0 %v884
    %904 = vmatprep.subr.bf16.mxu0 0
    %905 = vmatpush1.bf16.msra.mxu0 %v883
    %906 = vmatprep.subr.bf16.mxu0 0
    %907 = vmatpush2.bf16.msra.mxu0 0
    %908 = vmatprep.subr.bf16.mxu0 0
    %909 = vmatpush2.bf16.msra.mxu0 0
    %910 = vmatprep.subr.bf16.mxu0 0
    %911 = vmatpush2.bf16.msra.mxu0 0
    %912 = vmatprep.subr.bf16.mxu0 0
    %913 = vmatpush2.bf16.msra.mxu0 0
    %914 = vmatprep.subr.bf16.mxu0 0
    %915 = vmatpush2.bf16.msra.mxu0 0
    %916 = vmatprep.subr.bf16.mxu0 0
    %917 = vmatpush2.bf16.msra.mxu0 0
    %918 = vmatprep.subr.bf16.mxu0 0
    %919 = vmatpush2.bf16.msra.mxu0 0
    %920 = vmatprep.subr.bf16.mxu0 0
    %921 = vmatpush2.bf16.msra.mxu0 0
    %922 = vmatprep.mubr.bf16.mxu0 0
    %923 = vmatmul.mubr.bf16.gmra.mxu0 %v888
    %v924 = vpop.f32.mrf.mxu0
    %v925 = vadd.f32 %v869, %v924
    %v926 = vpop.f32.mrf.mxu0
    %v927 = vpop.f32.mrf.mxu0
    %v928 = vadd.f32 %v872, %v927
    %v929 = vpop.f32.mrf.mxu0
    %930 = vdwg.mxu0
    %v931 = vpack.c.bf16 %v763, %v760
    %v932 = vld [vmem:[%s3 + $0x20] sm:$0xf]
    %v933 = vld [vmem:[%s3 + $0x24] sm:$0xf]
    %v934 = vld [vmem:[%s3 + $0x28] sm:$0xf]
    %v935 = vld [vmem:[%s3 + $0x2c] sm:$0xf]
    %v940 = vunpack.c.l.b16 %v932
    %v941 = vunpack.c.l.b16 %v933
    %v942 = vunpack.c.l.b16 %v934
    %v943 = vunpack.c.l.b16 %v935
    %v944 = vpack.c.b16 %v941, %v940
    %v945 = vpack.c.b16 %v943, %v942
    %v949 = vsel %vm830, %v931, 0
    %951 = vmatprep.subr.bf16.mxu0 0
    %952 = vmatpush1.bf16.msra.mxu0 0
    %953 = vmatprep.subr.bf16.mxu0 0
    %954 = vmatpush1.bf16.msra.mxu0 0
    %955 = vmatprep.subr.bf16.mxu0 0
    %956 = vmatpush1.bf16.msra.mxu0 0
    %957 = vmatprep.subr.bf16.mxu0 0
    %958 = vmatpush1.bf16.msra.mxu0 0
    %959 = vmatprep.subr.bf16.mxu0 0
    %960 = vmatpush1.bf16.msra.mxu0 0
    %961 = vmatprep.subr.bf16.mxu0 0
    %962 = vmatpush1.bf16.msra.mxu0 0
    %963 = vmatprep.subr.bf16.mxu0 0
    %964 = vmatpush1.bf16.msra.mxu0 %v945
    %965 = vmatprep.subr.bf16.mxu0 0
    %966 = vmatpush1.bf16.msra.mxu0 %v944
    %967 = vmatprep.subr.bf16.mxu0 0
    %968 = vmatpush2.bf16.msra.mxu0 0
    %969 = vmatprep.subr.bf16.mxu0 0
    %970 = vmatpush2.bf16.msra.mxu0 0
    %971 = vmatprep.subr.bf16.mxu0 0
    %972 = vmatpush2.bf16.msra.mxu0 0
    %973 = vmatprep.subr.bf16.mxu0 0
    %974 = vmatpush2.bf16.msra.mxu0 0
    %975 = vmatprep.subr.bf16.mxu0 0
    %976 = vmatpush2.bf16.msra.mxu0 0
    %977 = vmatprep.subr.bf16.mxu0 0
    %978 = vmatpush2.bf16.msra.mxu0 0
    %979 = vmatprep.subr.bf16.mxu0 0
    %980 = vmatpush2.bf16.msra.mxu0 0
    %981 = vmatprep.subr.bf16.mxu0 0
    %982 = vmatpush2.bf16.msra.mxu0 0
    %983 = vmatprep.mubr.bf16.mxu0 0
    %984 = vmatmul.mubr.bf16.gmra.mxu0 %v949
    %v985 = vpop.f32.mrf.mxu0
    %v986 = vadd.f32 0.0, %v985
    %v987 = vpop.f32.mrf.mxu0
    %v988 = vpop.f32.mrf.mxu0
    %v989 = vadd.f32 0.0, %v988
    %v990 = vpop.f32.mrf.mxu0
    %991 = vdwg.mxu0
    %v992 = vadd.f32 %v925, %v986
    %v993 = vadd.f32 %v928, %v989
    %v994 = vld [vmem:[%s4] sm:$0x1]
    %v996 = vlaneseq
    %v997 = vshrl.u32 %v996, 7
    %v998 = vsub.s32 0, %v997
    %v999 = vrot.slane %v994, %v998
    %v1001 = vadd.f32 %v992, %v999
    %v1002 = vadd.f32 %v993, %v999
    %v1003 = vmax.f32 %v1001, 0.0
    %v1004 = vmax.f32 %v1002, 0.0
    %v1005 = vrot.slane %v1003, 6
    %v1006 = vrot.slane %v1004, 6
    %v1007 = vsel %vm768, %v1005, %v1006
    %v1008 = vsel %vm768, %v1006, %v1005
    %v1009 = vmul.f32 %v1008, %v785
    %v1010 = vmul.f32 %v1007, %v786
    %v1011 = vpack.c.bf16 %v1010, %v1009
    %v1012 = vld [vmem:[%s5] sm:$0xf]
    %v1013 = vld [vmem:[%s5 + $0x4] sm:$0xf]
    %v1014 = vld [vmem:[%s5 + $0x8] sm:$0xf]
    %v1015 = vld [vmem:[%s5 + $0xc] sm:$0xf]
    %v1016 = vrot.slane %v1003, 7
    %v1017 = vrot.slane %v1004, 7
    %v1018 = vsel %vm796, %v1016, %v1017
    %v1019 = vsel %vm796, %v1017, %v1016
    %v1020 = vmul.f32 %v1019, %v809
    %v1021 = vmul.f32 %v1018, %v810
    %v1022 = vpack.c.bf16 %v1021, %v1020
    %v1023 = vld [vmem:[%s5 + $0x10] sm:$0xf]
    %v1024 = vld [vmem:[%s5 + $0x14] sm:$0xf]
    %v1025 = vld [vmem:[%s5 + $0x18] sm:$0xf]
    %v1026 = vld [vmem:[%s5 + $0x1c] sm:$0xf]
    %v1031 = vunpack.c.l.b16 %v1023
    %v1032 = vunpack.c.l.b16 %v1024
    %v1033 = vunpack.c.l.b16 %v1025
    %v1034 = vunpack.c.l.b16 %v1026
    %v1035 = vpack.c.b16 %v1032, %v1031
    %v1036 = vpack.c.b16 %v1034, %v1033
    %v1040 = vsel %vm830, %v1022, 0
    %1042 = vmatprep.subr.bf16.mxu0 0
    %1043 = vmatpush1.bf16.msra.mxu0 0
    %1044 = vmatprep.subr.bf16.mxu0 0
    %1045 = vmatpush1.bf16.msra.mxu0 0
    %1046 = vmatprep.subr.bf16.mxu0 0
    %1047 = vmatpush1.bf16.msra.mxu0 0
    %1048 = vmatprep.subr.bf16.mxu0 0
    %1049 = vmatpush1.bf16.msra.mxu0 0
    %1050 = vmatprep.subr.bf16.mxu0 0
    %1051 = vmatpush1.bf16.msra.mxu0 0
    %1052 = vmatprep.subr.bf16.mxu0 0
    %1053 = vmatpush1.bf16.msra.mxu0 0
    %1054 = vmatprep.subr.bf16.mxu0 0
    %1055 = vmatpush1.bf16.msra.mxu0 %v1036
    %1056 = vmatprep.subr.bf16.mxu0 0
    %1057 = vmatpush1.bf16.msra.mxu0 %v1035
    %1058 = vmatprep.subr.bf16.mxu0 0
    %1059 = vmatpush2.bf16.msra.mxu0 0
    %1060 = vmatprep.subr.bf16.mxu0 0
    %1061 = vmatpush2.bf16.msra.mxu0 0
    %1062 = vmatprep.subr.bf16.mxu0 0
    %1063 = vmatpush2.bf16.msra.mxu0 0
    %1064 = vmatprep.subr.bf16.mxu0 0
    %1065 = vmatpush2.bf16.msra.mxu0 0
    %1066 = vmatprep.subr.bf16.mxu0 0
    %1067 = vmatpush2.bf16.msra.mxu0 0
    %1068 = vmatprep.subr.bf16.mxu0 0
    %1069 = vmatpush2.bf16.msra.mxu0 0
    %1070 = vmatprep.subr.bf16.mxu0 0
    %1071 = vmatpush2.bf16.msra.mxu0 0
    %1072 = vmatprep.subr.bf16.mxu0 0
    %1073 = vmatpush2.bf16.msra.mxu0 0
    %1074 = vmatprep.mubr.bf16.mxu0 0
    %1075 = vmatmul.mubr.bf16.gmra.mxu0 %v1040
    %v1076 = vpop.f32.mrf.mxu0
    %v1077 = vadd.f32 0.0, %v1076
    %v1078 = vpop.f32.mrf.mxu0
    %v1079 = vpop.f32.mrf.mxu0
    %v1080 = vadd.f32 0.0, %v1079
    %v1081 = vpop.f32.mrf.mxu0
    %1082 = vdwg.mxu0
    %v1087 = vunpack.c.l.b16 %v1012
    %v1088 = vunpack.c.l.b16 %v1013
    %v1089 = vunpack.c.l.b16 %v1014
    %v1090 = vunpack.c.l.b16 %v1015
    %v1091 = vpack.c.b16 %v1088, %v1087
    %v1092 = vpack.c.b16 %v1090, %v1089
    %v1096 = vsel %vm830, %v1011, 0
    %1098 = vmatprep.subr.bf16.mxu0 0
    %1099 = vmatpush1.bf16.msra.mxu0 0
    %1100 = vmatprep.subr.bf16.mxu0 0
    %1101 = vmatpush1.bf16.msra.mxu0 0
    %1102 = vmatprep.subr.bf16.mxu0 0
    %1103 = vmatpush1.bf16.msra.mxu0 0
    %1104 = vmatprep.subr.bf16.mxu0 0
    %1105 = vmatpush1.bf16.msra.mxu0 0
    %1106 = vmatprep.subr.bf16.mxu0 0
    %1107 = vmatpush1.bf16.msra.mxu0 0
    %1108 = vmatprep.subr.bf16.mxu0 0
    %1109 = vmatpush1.bf16.msra.mxu0 0
    %1110 = vmatprep.subr.bf16.mxu0 0
    %1111 = vmatpush1.bf16.msra.mxu0 %v1092
    %1112 = vmatprep.subr.bf16.mxu0 0
    %1113 = vmatpush1.bf16.msra.mxu0 %v1091
    %1114 = vmatprep.subr.bf16.mxu0 0
    %1115 = vmatpush2.bf16.msra.mxu0 0
    %1116 = vmatprep.subr.bf16.mxu0 0
    %1117 = vmatpush2.bf16.msra.mxu0 0
    %1118 = vmatprep.subr.bf16.mxu0 0
    %1119 = vmatpush2.bf16.msra.mxu0 0
    %1120 = vmatprep.subr.bf16.mxu0 0
    %1121 = vmatpush2.bf16.msra.mxu0 0
    %1122 = vmatprep.subr.bf16.mxu0 0
    %1123 = vmatpush2.bf16.msra.mxu0 0
    %1124 = vmatprep.subr.bf16.mxu0 0
    %1125 = vmatpush2.bf16.msra.mxu0 0
    %1126 = vmatprep.subr.bf16.mxu0 0
    %1127 = vmatpush2.bf16.msra.mxu0 0
    %1128 = vmatprep.subr.bf16.mxu0 0
    %1129 = vmatpush2.bf16.msra.mxu0 0
    %1130 = vmatprep.mubr.bf16.mxu0 0
    %1131 = vmatmul.mubr.bf16.gmra.mxu0 %v1096
    %v1132 = vpop.f32.mrf.mxu0
    %v1133 = vadd.f32 %v1077, %v1132
    %v1134 = vpop.f32.mrf.mxu0
    %v1135 = vpop.f32.mrf.mxu0
    %v1136 = vadd.f32 %v1080, %v1135
    %v1137 = vpop.f32.mrf.mxu0
    %1138 = vdwg.mxu0
    %v1139 = vpack.c.bf16 %v1004, %v1003
    %v1140 = vld [vmem:[%s5 + $0x20] sm:$0xf]
    %v1141 = vld [vmem:[%s5 + $0x24] sm:$0xf]
    %v1142 = vld [vmem:[%s5 + $0x28] sm:$0xf]
    %v1143 = vld [vmem:[%s5 + $0x2c] sm:$0xf]
    %v1148 = vunpack.c.l.b16 %v1140
    %v1149 = vunpack.c.l.b16 %v1141
    %v1150 = vunpack.c.l.b16 %v1142
    %v1151 = vunpack.c.l.b16 %v1143
    %v1152 = vpack.c.b16 %v1149, %v1148
    %v1153 = vpack.c.b16 %v1151, %v1150
    %v1157 = vsel %vm830, %v1139, 0
    %1159 = vmatprep.subr.bf16.mxu0 0
    %1160 = vmatpush1.bf16.msra.mxu0 0
    %1161 = vmatprep.subr.bf16.mxu0 0
    %1162 = vmatpush1.bf16.msra.mxu0 0
    %1163 = vmatprep.subr.bf16.mxu0 0
    %1164 = vmatpush1.bf16.msra.mxu0 0
    %1165 = vmatprep.subr.bf16.mxu0 0
    %1166 = vmatpush1.bf16.msra.mxu0 0
    %1167 = vmatprep.subr.bf16.mxu0 0
    %1168 = vmatpush1.bf16.msra.mxu0 0
    %1169 = vmatprep.subr.bf16.mxu0 0
    %1170 = vmatpush1.bf16.msra.mxu0 0
    %1171 = vmatprep.subr.bf16.mxu0 0
    %1172 = vmatpush1.bf16.msra.mxu0 %v1153
    %1173 = vmatprep.subr.bf16.mxu0 0
    %1174 = vmatpush1.bf16.msra.mxu0 %v1152
    %1175 = vmatprep.subr.bf16.mxu0 0
    %1176 = vmatpush2.bf16.msra.mxu0 0
    %1177 = vmatprep.subr.bf16.mxu0 0
    %1178 = vmatpush2.bf16.msra.mxu0 0
    %1179 = vmatprep.subr.bf16.mxu0 0
    %1180 = vmatpush2.bf16.msra.mxu0 0
    %1181 = vmatprep.subr.bf16.mxu0 0
    %1182 = vmatpush2.bf16.msra.mxu0 0
    %1183 = vmatprep.subr.bf16.mxu0 0
    %1184 = vmatpush2.bf16.msra.mxu0 0
    %1185 = vmatprep.subr.bf16.mxu0 0
    %1186 = vmatpush2.bf16.msra.mxu0 0
    %1187 = vmatprep.subr.bf16.mxu0 0
    %1188 = vmatpush2.bf16.msra.mxu0 0
    %1189 = vmatprep.subr.bf16.mxu0 0
    %1190 = vmatpush2.bf16.msra.mxu0 0
    %1191 = vmatprep.mubr.bf16.mxu0 0
    %1192 = vmatmul.mubr.bf16.gmra.mxu0 %v1157
    %v1193 = vpop.f32.mrf.mxu0
    %v1194 = vadd.f32 0.0, %v1193
    %v1195 = vpop.f32.mrf.mxu0
    %v1196 = vpop.f32.mrf.mxu0
    %v1197 = vadd.f32 0.0, %v1196
    %v1198 = vpop.f32.mrf.mxu0
    %1199 = vdwg.mxu0
    %v1200 = vadd.f32 %v1133, %v1194
    %v1201 = vadd.f32 %v1136, %v1197
    %v1202 = vld [vmem:[%s6] sm:$0x1]
    %v1204 = vlaneseq
    %v1205 = vshrl.u32 %v1204, 7
    %v1206 = vsub.s32 0, %v1205
    %v1207 = vrot.slane %v1202, %v1206
    %v1209 = vadd.f32 %v1200, %v1207
    %v1210 = vadd.f32 %v1201, %v1207
    %v1211 = vmax.f32 %v1209, 0.0
    %v1212 = vmax.f32 %v1210, 0.0
    %v1213 = vadd.f32 %v1211, %v760
    %v1214 = vadd.f32 %v1212, %v763
    %v1215 = vmax.f32 %v1213, 0.0
    %v1216 = vmax.f32 %v1214, 0.0
    %v1217 = vrot.slane %v1215, 4
    %v1218 = vrot.slane %v1216, 4
    %vm1219 = vcmp.lt.s32.totalorder %v682, 4
    %v1220 = vsel %vm1219, %v1217, %v1218
    %v1221 = vsel %vm1219, %v1218, %v1217
    %vm1222 = vcmp.ge.s32.totalorder %v682, 4
    %vm1223 = vcmp.ge.s32.totalorder %v683, 4
    %vm1224 = vmor %vm771, %vm1222
    %vm1225 = vmor %vm772, %vm1223
    %vm1226 = vcmp.ge.s32.totalorder %v682, 12
    %vm1227 = vcmp.ge.s32.totalorder %v683, 12
    %vm1228 = vmor %vm777, %vm1226
    %vm1229 = vmor %vm778, %vm1227
    %vm1230 = vmand %vm1224, %vm1228
    %vm1231 = vmand %vm1225, %vm1229
    %v1232 = vsel %vm1230, 1.0, 0.0
    %v1233 = vsel %vm1231, 1.0, 0.0
    %v1234 = vmul.f32 %v1221, %v1232
    %v1235 = vmul.f32 %v1220, %v1233
    %v1236 = vpack.c.bf16 %v1235, %v1234
    %v1237 = vld [vmem:[%s7] sm:$0xf]
    %v1238 = vld [vmem:[%s7 + $0x4] sm:$0xf]
    %v1239 = vld [vmem:[%s7 + $0x8] sm:$0xf]
    %v1240 = vld [vmem:[%s7 + $0xc] sm:$0xf]
    %v1241 = vrot.slane %v1215, 6
    %v1242 = vrot.slane %v1216, 6
    %v1243 = vsel %vm768, %v1241, %v1242
    %v1244 = vsel %vm768, %v1242, %v1241
    %v1245 = vmul.f32 %v1244, %v785
    %v1246 = vmul.f32 %v1243, %v786
    %v1247 = vpack.c.bf16 %v1246, %v1245
    %v1248 = vld [vmem:[%s7 + $0x10] sm:$0xf]
    %v1249 = vld [vmem:[%s7 + $0x14] sm:$0xf]
    %v1250 = vld [vmem:[%s7 + $0x18] sm:$0xf]
    %v1251 = vld [vmem:[%s7 + $0x1c] sm:$0xf]
    %v1256 = vunpack.c.l.b16 %v1248
    %v1257 = vunpack.c.l.b16 %v1249
    %v1258 = vunpack.c.l.b16 %v1250
    %v1259 = vunpack.c.l.b16 %v1251
    %v1260 = vpack.c.b16 %v1257, %v1256
    %v1261 = vpack.c.b16 %v1259, %v1258
    %v1265 = vsel %vm830, %v1247, 0
    %1267 = vmatprep.subr.bf16.mxu0 0
    %1268 = vmatpush1.bf16.msra.mxu0 0
    %1269 = vmatprep.subr.bf16.mxu0 0
    %1270 = vmatpush1.bf16.msra.mxu0 0
    %1271 = vmatprep.subr.bf16.mxu0 0
    %1272 = vmatpush1.bf16.msra.mxu0 0
    %1273 = vmatprep.subr.bf16.mxu0 0
    %1274 = vmatpush1.bf16.msra.mxu0 0
    %1275 = vmatprep.subr.bf16.mxu0 0
    %1276 = vmatpush1.bf16.msra.mxu0 0
    %1277 = vmatprep.subr.bf16.mxu0 0
    %1278 = vmatpush1.bf16.msra.mxu0 0
    %1279 = vmatprep.subr.bf16.mxu0 0
    %1280 = vmatpush1.bf16.msra.mxu0 %v1261
    %1281 = vmatprep.subr.bf16.mxu0 0
    %1282 = vmatpush1.bf16.msra.mxu0 %v1260
    %1283 = vmatprep.subr.bf16.mxu0 0
    %1284 = vmatpush2.bf16.msra.mxu0 0
    %1285 = vmatprep.subr.bf16.mxu0 0
    %1286 = vmatpush2.bf16.msra.mxu0 0
    %1287 = vmatprep.subr.bf16.mxu0 0
    %1288 = vmatpush2.bf16.msra.mxu0 0
    %1289 = vmatprep.subr.bf16.mxu0 0
    %1290 = vmatpush2.bf16.msra.mxu0 0
    %1291 = vmatprep.subr.bf16.mxu0 0
    %1292 = vmatpush2.bf16.msra.mxu0 0
    %1293 = vmatprep.subr.bf16.mxu0 0
    %1294 = vmatpush2.bf16.msra.mxu0 0
    %1295 = vmatprep.subr.bf16.mxu0 0
    %1296 = vmatpush2.bf16.msra.mxu0 0
    %1297 = vmatprep.subr.bf16.mxu0 0
    %1298 = vmatpush2.bf16.msra.mxu0 0
    %1299 = vmatprep.mubr.bf16.mxu0 0
    %1300 = vmatmul.mubr.bf16.gmra.mxu0 %v1265
    %v1301 = vpop.f32.mrf.mxu0
    %v1302 = vadd.f32 0.0, %v1301
    %v1303 = vpop.f32.mrf.mxu0
    %v1304 = vpop.f32.mrf.mxu0
    %v1305 = vadd.f32 0.0, %v1304
    %v1306 = vpop.f32.mrf.mxu0
    %1307 = vdwg.mxu0
    %v1312 = vunpack.c.l.b16 %v1237
    %v1313 = vunpack.c.l.b16 %v1238
    %v1314 = vunpack.c.l.b16 %v1239
    %v1315 = vunpack.c.l.b16 %v1240
    %v1316 = vpack.c.b16 %v1313, %v1312
    %v1317 = vpack.c.b16 %v1315, %v1314
    %v1321 = vsel %vm830, %v1236, 0
    %1323 = vmatprep.subr.bf16.mxu0 0
    %1324 = vmatpush1.bf16.msra.mxu0 0
    %1325 = vmatprep.subr.bf16.mxu0 0
    %1326 = vmatpush1.bf16.msra.mxu0 0
    %1327 = vmatprep.subr.bf16.mxu0 0
    %1328 = vmatpush1.bf16.msra.mxu0 0
    %1329 = vmatprep.subr.bf16.mxu0 0
    %1330 = vmatpush1.bf16.msra.mxu0 0
    %1331 = vmatprep.subr.bf16.mxu0 0
    %1332 = vmatpush1.bf16.msra.mxu0 0
    %1333 = vmatprep.subr.bf16.mxu0 0
    %1334 = vmatpush1.bf16.msra.mxu0 0
    %1335 = vmatprep.subr.bf16.mxu0 0
    %1336 = vmatpush1.bf16.msra.mxu0 %v1317
    %1337 = vmatprep.subr.bf16.mxu0 0
    %1338 = vmatpush1.bf16.msra.mxu0 %v1316
    %1339 = vmatprep.subr.bf16.mxu0 0
    %1340 = vmatpush2.bf16.msra.mxu0 0
    %1341 = vmatprep.subr.bf16.mxu0 0
    %1342 = vmatpush2.bf16.msra.mxu0 0
    %1343 = vmatprep.subr.bf16.mxu0 0
    %1344 = vmatpush2.bf16.msra.mxu0 0
    %1345 = vmatprep.subr.bf16.mxu0 0
    %1346 = vmatpush2.bf16.msra.mxu0 0
    %1347 = vmatprep.subr.bf16.mxu0 0
    %1348 = vmatpush2.bf16.msra.mxu0 0
    %1349 = vmatprep.subr.bf16.mxu0 0
    %1350 = vmatpush2.bf16.msra.mxu0 0
    %1351 = vmatprep.subr.bf16.mxu0 0
    %1352 = vmatpush2.bf16.msra.mxu0 0
    %1353 = vmatprep.subr.bf16.mxu0 0
    %1354 = vmatpush2.bf16.msra.mxu0 0
    %1355 = vmatprep.mubr.bf16.mxu0 0
    %1356 = vmatmul.mubr.bf16.gmra.mxu0 %v1321
    %v1357 = vpop.f32.mrf.mxu0
    %v1358 = vadd.f32 %v1302, %v1357
    %v1359 = vpop.f32.mrf.mxu0
    %v1360 = vpop.f32.mrf.mxu0
    %v1361 = vadd.f32 %v1305, %v1360
    %v1362 = vpop.f32.mrf.mxu0
    %1363 = vdwg.mxu0
    %v1364 = vpack.c.bf16 %v1216, %v1215
    %v1365 = vld [vmem:[%s7 + $0x20] sm:$0xf]
    %v1366 = vld [vmem:[%s7 + $0x24] sm:$0xf]
    %v1367 = vld [vmem:[%s7 + $0x28] sm:$0xf]
    %v1368 = vld [vmem:[%s7 + $0x2c] sm:$0xf]
    %v1373 = vunpack.c.l.b16 %v1365
    %v1374 = vunpack.c.l.b16 %v1366
    %v1375 = vunpack.c.l.b16 %v1367
    %v1376 = vunpack.c.l.b16 %v1368
    %v1377 = vpack.c.b16 %v1374, %v1373
    %v1378 = vpack.c.b16 %v1376, %v1375
    %v1382 = vsel %vm830, %v1364, 0
    %1384 = vmatprep.subr.bf16.mxu0 0
    %1385 = vmatpush1.bf16.msra.mxu0 0
    %1386 = vmatprep.subr.bf16.mxu0 0
    %1387 = vmatpush1.bf16.msra.mxu0 0
    %1388 = vmatprep.subr.bf16.mxu0 0
    %1389 = vmatpush1.bf16.msra.mxu0 0
    %1390 = vmatprep.subr.bf16.mxu0 0
    %1391 = vmatpush1.bf16.msra.mxu0 0
    %1392 = vmatprep.subr.bf16.mxu0 0
    %1393 = vmatpush1.bf16.msra.mxu0 0
    %1394 = vmatprep.subr.bf16.mxu0 0
    %1395 = vmatpush1.bf16.msra.mxu0 0
    %1396 = vmatprep.subr.bf16.mxu0 0
    %1397 = vmatpush1.bf16.msra.mxu0 %v1378
    %1398 = vmatprep.subr.bf16.mxu0 0
    %1399 = vmatpush1.bf16.msra.mxu0 %v1377
    %1400 = vmatprep.subr.bf16.mxu0 0
    %1401 = vmatpush2.bf16.msra.mxu0 0
    %1402 = vmatprep.subr.bf16.mxu0 0
    %1403 = vmatpush2.bf16.msra.mxu0 0
    %1404 = vmatprep.subr.bf16.mxu0 0
    %1405 = vmatpush2.bf16.msra.mxu0 0
    %1406 = vmatprep.subr.bf16.mxu0 0
    %1407 = vmatpush2.bf16.msra.mxu0 0
    %1408 = vmatprep.subr.bf16.mxu0 0
    %1409 = vmatpush2.bf16.msra.mxu0 0
    %1410 = vmatprep.subr.bf16.mxu0 0
    %1411 = vmatpush2.bf16.msra.mxu0 0
    %1412 = vmatprep.subr.bf16.mxu0 0
    %1413 = vmatpush2.bf16.msra.mxu0 0
    %1414 = vmatprep.subr.bf16.mxu0 0
    %1415 = vmatpush2.bf16.msra.mxu0 0
    %1416 = vmatprep.mubr.bf16.mxu0 0
    %1417 = vmatmul.mubr.bf16.gmra.mxu0 %v1382
    %v1418 = vpop.f32.mrf.mxu0
    %v1419 = vadd.f32 0.0, %v1418
    %v1420 = vpop.f32.mrf.mxu0
    %v1421 = vpop.f32.mrf.mxu0
    %v1422 = vadd.f32 0.0, %v1421
    %v1423 = vpop.f32.mrf.mxu0
    %1424 = vdwg.mxu0
    %v1425 = vadd.f32 %v1358, %v1419
    %v1426 = vadd.f32 %v1361, %v1422
    %v1427 = vld [vmem:[%s8] sm:$0x1]
    %v1429 = vlaneseq
    %v1430 = vshrl.u32 %v1429, 7
    %v1431 = vsub.s32 0, %v1430
    %v1432 = vrot.slane %v1427, %v1431
    %v1434 = vadd.f32 %v1425, %v1432
    %v1435 = vadd.f32 %v1426, %v1432
    %v1436 = vmax.f32 %v1434, 0.0
    %v1437 = vmax.f32 %v1435, 0.0
    %v1438 = vrot.slane %v1436, 4
    %v1439 = vrot.slane %v1437, 4
    %v1440 = vsel %vm1219, %v1438, %v1439
    %v1441 = vsel %vm1219, %v1439, %v1438
    %v1442 = vmul.f32 %v1441, %v1232
    %v1443 = vmul.f32 %v1440, %v1233
    %v1444 = vpack.c.bf16 %v1443, %v1442
    %v1445 = vld [vmem:[%s9] sm:$0xf]
    %v1446 = vld [vmem:[%s9 + $0x4] sm:$0xf]
    %v1447 = vld [vmem:[%s9 + $0x8] sm:$0xf]
    %v1448 = vld [vmem:[%s9 + $0xc] sm:$0xf]
    %v1449 = vrot.slane %v1436, 6
    %v1450 = vrot.slane %v1437, 6
    %v1451 = vsel %vm768, %v1449, %v1450
    %v1452 = vsel %vm768, %v1450, %v1449
    %v1453 = vmul.f32 %v1452, %v785
    %v1454 = vmul.f32 %v1451, %v786
    %v1455 = vpack.c.bf16 %v1454, %v1453
    %v1456 = vld [vmem:[%s9 + $0x10] sm:$0xf]
    %v1457 = vld [vmem:[%s9 + $0x14] sm:$0xf]
    %v1458 = vld [vmem:[%s9 + $0x18] sm:$0xf]
    %v1459 = vld [vmem:[%s9 + $0x1c] sm:$0xf]
    %v1464 = vunpack.c.l.b16 %v1456
    %v1465 = vunpack.c.l.b16 %v1457
    %v1466 = vunpack.c.l.b16 %v1458
    %v1467 = vunpack.c.l.b16 %v1459
    %v1468 = vpack.c.b16 %v1465, %v1464
    %v1469 = vpack.c.b16 %v1467, %v1466
    %v1473 = vsel %vm830, %v1455, 0
    %1475 = vmatprep.subr.bf16.mxu0 0
    %1476 = vmatpush1.bf16.msra.mxu0 0
    %1477 = vmatprep.subr.bf16.mxu0 0
    %1478 = vmatpush1.bf16.msra.mxu0 0
    %1479 = vmatprep.subr.bf16.mxu0 0
    %1480 = vmatpush1.bf16.msra.mxu0 0
    %1481 = vmatprep.subr.bf16.mxu0 0
    %1482 = vmatpush1.bf16.msra.mxu0 0
    %1483 = vmatprep.subr.bf16.mxu0 0
    %1484 = vmatpush1.bf16.msra.mxu0 0
    %1485 = vmatprep.subr.bf16.mxu0 0
    %1486 = vmatpush1.bf16.msra.mxu0 0
    %1487 = vmatprep.subr.bf16.mxu0 0
    %1488 = vmatpush1.bf16.msra.mxu0 %v1469
    %1489 = vmatprep.subr.bf16.mxu0 0
    %1490 = vmatpush1.bf16.msra.mxu0 %v1468
    %1491 = vmatprep.subr.bf16.mxu0 0
    %1492 = vmatpush2.bf16.msra.mxu0 0
    %1493 = vmatprep.subr.bf16.mxu0 0
    %1494 = vmatpush2.bf16.msra.mxu0 0
    %1495 = vmatprep.subr.bf16.mxu0 0
    %1496 = vmatpush2.bf16.msra.mxu0 0
    %1497 = vmatprep.subr.bf16.mxu0 0
    %1498 = vmatpush2.bf16.msra.mxu0 0
    %1499 = vmatprep.subr.bf16.mxu0 0
    %1500 = vmatpush2.bf16.msra.mxu0 0
    %1501 = vmatprep.subr.bf16.mxu0 0
    %1502 = vmatpush2.bf16.msra.mxu0 0
    %1503 = vmatprep.subr.bf16.mxu0 0
    %1504 = vmatpush2.bf16.msra.mxu0 0
    %1505 = vmatprep.subr.bf16.mxu0 0
    %1506 = vmatpush2.bf16.msra.mxu0 0
    %1507 = vmatprep.mubr.bf16.mxu0 0
    %1508 = vmatmul.mubr.bf16.gmra.mxu0 %v1473
    %v1509 = vpop.f32.mrf.mxu0
    %v1510 = vadd.f32 0.0, %v1509
    %v1511 = vpop.f32.mrf.mxu0
    %v1512 = vpop.f32.mrf.mxu0
    %v1513 = vadd.f32 0.0, %v1512
    %v1514 = vpop.f32.mrf.mxu0
    %1515 = vdwg.mxu0
    %v1520 = vunpack.c.l.b16 %v1445
    %v1521 = vunpack.c.l.b16 %v1446
    %v1522 = vunpack.c.l.b16 %v1447
    %v1523 = vunpack.c.l.b16 %v1448
    %v1524 = vpack.c.b16 %v1521, %v1520
    %v1525 = vpack.c.b16 %v1523, %v1522
    %v1529 = vsel %vm830, %v1444, 0
    %1531 = vmatprep.subr.bf16.mxu0 0
    %1532 = vmatpush1.bf16.msra.mxu0 0
    %1533 = vmatprep.subr.bf16.mxu0 0
    %1534 = vmatpush1.bf16.msra.mxu0 0
    %1535 = vmatprep.subr.bf16.mxu0 0
    %1536 = vmatpush1.bf16.msra.mxu0 0
    %1537 = vmatprep.subr.bf16.mxu0 0
    %1538 = vmatpush1.bf16.msra.mxu0 0
    %1539 = vmatprep.subr.bf16.mxu0 0
    %1540 = vmatpush1.bf16.msra.mxu0 0
    %1541 = vmatprep.subr.bf16.mxu0 0
    %1542 = vmatpush1.bf16.msra.mxu0 0
    %1543 = vmatprep.subr.bf16.mxu0 0
    %1544 = vmatpush1.bf16.msra.mxu0 %v1525
    %1545 = vmatprep.subr.bf16.mxu0 0
    %1546 = vmatpush1.bf16.msra.mxu0 %v1524
    %1547 = vmatprep.subr.bf16.mxu0 0
    %1548 = vmatpush2.bf16.msra.mxu0 0
    %1549 = vmatprep.subr.bf16.mxu0 0
    %1550 = vmatpush2.bf16.msra.mxu0 0
    %1551 = vmatprep.subr.bf16.mxu0 0
    %1552 = vmatpush2.bf16.msra.mxu0 0
    %1553 = vmatprep.subr.bf16.mxu0 0
    %1554 = vmatpush2.bf16.msra.mxu0 0
    %1555 = vmatprep.subr.bf16.mxu0 0
    %1556 = vmatpush2.bf16.msra.mxu0 0
    %1557 = vmatprep.subr.bf16.mxu0 0
    %1558 = vmatpush2.bf16.msra.mxu0 0
    %1559 = vmatprep.subr.bf16.mxu0 0
    %1560 = vmatpush2.bf16.msra.mxu0 0
    %1561 = vmatprep.subr.bf16.mxu0 0
    %1562 = vmatpush2.bf16.msra.mxu0 0
    %1563 = vmatprep.mubr.bf16.mxu0 0
    %1564 = vmatmul.mubr.bf16.gmra.mxu0 %v1529
    %v1565 = vpop.f32.mrf.mxu0
    %v1566 = vadd.f32 %v1510, %v1565
    %v1567 = vpop.f32.mrf.mxu0
    %v1568 = vpop.f32.mrf.mxu0
    %v1569 = vadd.f32 %v1513, %v1568
    %v1570 = vpop.f32.mrf.mxu0
    %1571 = vdwg.mxu0
    %v1572 = vpack.c.bf16 %v1437, %v1436
    %v1573 = vld [vmem:[%s9 + $0x20] sm:$0xf]
    %v1574 = vld [vmem:[%s9 + $0x24] sm:$0xf]
    %v1575 = vld [vmem:[%s9 + $0x28] sm:$0xf]
    %v1576 = vld [vmem:[%s9 + $0x2c] sm:$0xf]
    %v1581 = vunpack.c.l.b16 %v1573
    %v1582 = vunpack.c.l.b16 %v1574
    %v1583 = vunpack.c.l.b16 %v1575
    %v1584 = vunpack.c.l.b16 %v1576
    %v1585 = vpack.c.b16 %v1582, %v1581
    %v1586 = vpack.c.b16 %v1584, %v1583
    %v1590 = vsel %vm830, %v1572, 0
    %1592 = vmatprep.subr.bf16.mxu0 0
    %1593 = vmatpush1.bf16.msra.mxu0 0
    %1594 = vmatprep.subr.bf16.mxu0 0
    %1595 = vmatpush1.bf16.msra.mxu0 0
    %1596 = vmatprep.subr.bf16.mxu0 0
    %1597 = vmatpush1.bf16.msra.mxu0 0
    %1598 = vmatprep.subr.bf16.mxu0 0
    %1599 = vmatpush1.bf16.msra.mxu0 0
    %1600 = vmatprep.subr.bf16.mxu0 0
    %1601 = vmatpush1.bf16.msra.mxu0 0
    %1602 = vmatprep.subr.bf16.mxu0 0
    %1603 = vmatpush1.bf16.msra.mxu0 0
    %1604 = vmatprep.subr.bf16.mxu0 0
    %1605 = vmatpush1.bf16.msra.mxu0 %v1586
    %1606 = vmatprep.subr.bf16.mxu0 0
    %1607 = vmatpush1.bf16.msra.mxu0 %v1585
    %1608 = vmatprep.subr.bf16.mxu0 0
    %1609 = vmatpush2.bf16.msra.mxu0 0
    %1610 = vmatprep.subr.bf16.mxu0 0
    %1611 = vmatpush2.bf16.msra.mxu0 0
    %1612 = vmatprep.subr.bf16.mxu0 0
    %1613 = vmatpush2.bf16.msra.mxu0 0
    %1614 = vmatprep.subr.bf16.mxu0 0
    %1615 = vmatpush2.bf16.msra.mxu0 0
    %1616 = vmatprep.subr.bf16.mxu0 0
    %1617 = vmatpush2.bf16.msra.mxu0 0
    %1618 = vmatprep.subr.bf16.mxu0 0
    %1619 = vmatpush2.bf16.msra.mxu0 0
    %1620 = vmatprep.subr.bf16.mxu0 0
    %1621 = vmatpush2.bf16.msra.mxu0 0
    %1622 = vmatprep.subr.bf16.mxu0 0
    %1623 = vmatpush2.bf16.msra.mxu0 0
    %1624 = vmatprep.mubr.bf16.mxu0 0
    %1625 = vmatmul.mubr.bf16.gmra.mxu0 %v1590
    %v1626 = vpop.f32.mrf.mxu0
    %v1627 = vadd.f32 0.0, %v1626
    %v1628 = vpop.f32.mrf.mxu0
    %v1629 = vpop.f32.mrf.mxu0
    %v1630 = vadd.f32 0.0, %v1629
    %v1631 = vpop.f32.mrf.mxu0
    %1632 = vdwg.mxu0
    %v1633 = vadd.f32 %v1566, %v1627
    %v1634 = vadd.f32 %v1569, %v1630
    %v1635 = vld [vmem:[%s10] sm:$0x1]
    %v1637 = vlaneseq
    %v1638 = vshrl.u32 %v1637, 7
    %v1639 = vsub.s32 0, %v1638
    %v1640 = vrot.slane %v1635, %v1639
    %v1642 = vadd.f32 %v1633, %v1640
    %v1643 = vadd.f32 %v1634, %v1640
    %v1644 = vmax.f32 %v1642, 0.0
    %v1645 = vmax.f32 %v1643, 0.0
    %v1646 = vadd.f32 %v1644, %v1215
    %v1647 = vadd.f32 %v1645, %v1216
    %v1648 = vmax.f32 %v1646, 0.0
    %v1649 = vmax.f32 %v1647, 0.0
    %v1651 = vrot.slane %v1648, 7
    %v1654 = vrot.slane %v1649, 6
    %vm1656 = vcmask 1040384
    %v1657 = vsel %vm1656, %v1651, %v1654
    %vm1658 = vcmask 254976
    %1659 = vst.msk [vmem:[#allocation2] sm:$0x3] %vm1658, %v1657
    // Predicated region
    $region46: #{video_encoder_forward.1} parent=1 // pred_check
      _
    $region47: #{video_encoder_forward.1} parent=1 // pred_check_branch
      %1661 = sbr.rel (0) target = $region49
    $region48: #{video_encoder_forward.1} parent=1 // pred_region
      %s1663 = ssub.s32 32, 32
      %1664 = vsyncadd [#allocation3], %s1663
      %s1666 = sshll.u32 [#allocation2], 4
      %s1667 = int_to_ptr.vmem [resolvable:$true] %s1666
      %1669 = dma.vmem_to_hbm [thread:$0]  %s1667, 32, %s11, [#allocation3]
    $region49: #{video_encoder_forward.1} parent=1 // pred_fallthru
      _
    // Predicated region
    $region50: #{video_encoder_forward.1} parent=1 // pred_check
      _
    $region51: #{video_encoder_forward.1} parent=1 // pred_check_branch
      %1671 = sbr.rel (0) target = $region53
    $region52: #{video_encoder_forward.1} parent=1 // pred_region
      %1672 = dma.done [#allocation3], 32
    $region53: #{video_encoder_forward.1} parent=1 // pred_fallthru
      _
    %1673 = vsyncpa [#allocation3], 1

</llo_original>
